<compile_context>
chip_gen: v6e
topology: v6e:2x2x1
jax: 0.10.0
libtpu: 0.0.40
codegen_flags: <defaults>
</compile_context>

<pallas_src>
import functools

import jax
import jax.numpy as jnp
from jax import lax
from jax.experimental import pallas as pl
from jax.experimental.pallas import tpu as pltpu

INPUT_SIZE = 10
HIDDEN = 128
OUT_DIM = 2
OUT_PAD = 128  # lane-dense padded output width for the final Linear


def _sigmoid(x):
    # One EUP tanh per gate instead of exp + reciprocal.
    return 0.5 * jnp.tanh(0.5 * x) + 0.5


def lstm_kernel(x_ref, w_ih_ref, w_hh_ref, b_ref, w_out_ref, b_out_ref,
                out_ref, gx_ref, *, seq_len, batch):
    # x_ref:     (T*Bp, I)   bf16, time-major, batch padded to multiple of 8
    # w_ih_ref:  (I, 4H)     bf16, pre-transposed
    # w_hh_ref:  (H, 4H)     bf16, pre-transposed
    # b_ref:     (1, 4H)     f32, b_ih + b_hh
    # w_out_ref: (H, OUT_PAD) bf16, pre-transposed, zero-padded lanes
    # b_out_ref: (1, OUT_PAD) f32, zero-padded lanes
    # out_ref:   (Bp, OUT_PAD) f32
    # gx_ref:    (T*Bp, 4H)  f32 VMEM scratch

    # ---- Prologue (off the recurrence critical path) -----------------------
    # Hoisted input projection for all timesteps + single bias add, stored to
    # an explicit VMEM scratch so it doesn't occupy vregs across the loop.
    gx_ref[...] = (jnp.dot(x_ref[...], w_ih_ref[...],
                           preferred_element_type=jnp.float32)
                   + b_ref[...])                               # (T*Bp, 4H)

    # ---- Recurrence: h/c live in vregs, statically unrolled ----------------
    h = jnp.zeros((batch, HIDDEN), jnp.float32)
    c = jnp.zeros((batch, HIDDEN), jnp.float32)

    for t in range(seq_len):
        # Tile-aligned (Bp, 4H) slab of the precomputed input contribution.
        g_x = gx_ref[pl.ds(t * batch, batch), :]               # (Bp, 4H) f32
        gates = g_x + jnp.dot(h.astype(jnp.bfloat16), w_hh_ref[...],
                              preferred_element_type=jnp.float32)
        # Lane-aligned 128-wide gate slices, PyTorch order i, f, g, o.
        i_g = _sigmoid(gates[:, 0 * HIDDEN:1 * HIDDEN])
        f_g = _sigmoid(gates[:, 1 * HIDDEN:2 * HIDDEN])
        g_g = jnp.tanh(gates[:, 2 * HIDDEN:3 * HIDDEN])
        o_g = _sigmoid(gates[:, 3 * HIDDEN:4 * HIDDEN])
        c = f_g * c + i_g * g_g
        h = o_g * jnp.tanh(c)

    # ---- Output projection on the last hidden state (== r_out[:, -1, :]) ---
    # Lane-dense (Bp, 128) result; wrapper slices [:, :OUT_DIM].
    out_ref[...] = (jnp.dot(h.astype(jnp.bfloat16), w_out_ref[...],
                            preferred_element_type=jnp.float32)
                    + b_out_ref[...])


def lstm_forward(x, params):
    """x: (B, T, INPUT_SIZE) batch-first, float32. Returns (B, 2)."""
    w_ih, w_hh, b_ih, b_hh, w_out, b_out = params
    B, T, I = x.shape
    assert I == INPUT_SIZE

    # Pad batch up to a multiple of 8 sublanes so every in-kernel slab is a
    # tile-aligned, unmasked (8, 512) slice.
    B_pad = max(8, ((B + 7) // 8) * 8)

    x_tm = jnp.transpose(x, (1, 0, 2)).astype(jnp.float32)       # (T, B, I)
    x_tm = jnp.pad(x_tm, ((0, 0), (0, B_pad - B), (0, 0)))       # (T, Bp, I)
    x_flat = x_tm.reshape(T * B_pad, I).astype(jnp.bfloat16)     # (T*Bp, I)

    # Matmul operands in bf16 (MXU-native); accumulation stays f32.
    w_ih_t = jnp.transpose(w_ih).astype(jnp.bfloat16)            # (I, 4H)
    w_hh_t = jnp.transpose(w_hh).astype(jnp.bfloat16)            # (H, 4H)
    b = (b_ih + b_hh).reshape(1, 4 * HIDDEN).astype(jnp.float32)

    # Lane-dense final projection: zero-pad N=2 -> 128.
    w_out_t = jnp.transpose(w_out).astype(jnp.float32)           # (H, 2)
    w_out_pad = jnp.pad(
        w_out_t, ((0, 0), (0, OUT_PAD - OUT_DIM))).astype(jnp.bfloat16)
    b_out_pad = jnp.pad(
        b_out.reshape(1, OUT_DIM).astype(jnp.float32),
        ((0, 0), (0, OUT_PAD - OUT_DIM)))

    vmem = pl.BlockSpec(memory_space=pltpu.MemorySpace.VMEM)
    out_padded = pl.pallas_call(
        functools.partial(lstm_kernel, seq_len=T, batch=B_pad),
        out_shape=jax.ShapeDtypeStruct((B_pad, OUT_PAD), jnp.float32),
        in_specs=[vmem] * 6,
        out_specs=vmem,
        scratch_shapes=[pltpu.VMEM((T * B_pad, 4 * HIDDEN), jnp.float32)],
    )(x_flat, w_ih_t, w_hh_t, b, w_out_pad, b_out_pad)
    return out_padded[:B, :OUT_DIM]


def reference_forward(x, params):
    """Pure-JAX f32 reference mirroring torch.nn.LSTM + Linear semantics."""
    w_ih, w_hh, b_ih, b_hh, w_out, b_out = params

    def cell(carry, x_t):
        h, c = carry
        gates = x_t @ w_ih.T + b_ih + h @ w_hh.T + b_hh
        i, f, g, o = jnp.split(gates, 4, axis=-1)
        c = jax.nn.sigmoid(f) * c + jax.nn.sigmoid(i) * jnp.tanh(g)
        h = jax.nn.sigmoid(o) * jnp.tanh(c)
        return (h, c), None

    B = x.shape[0]
    h0 = jnp.zeros((B, HIDDEN), jnp.float32)
    (h_last, _), _ = lax.scan(cell, (h0, h0), jnp.transpose(x, (1, 0, 2)))
    return h_last @ w_out.T + b_out


if __name__ == "__main__":
    key = jax.random.PRNGKey(0)
    ks = jax.random.split(key, 7)
    B, T = 2, 8

    # Deterministic init matching the PyTorch parameter shapes
    # (uniform(-1/sqrt(H), 1/sqrt(H)) like nn.LSTM's default).
    s = 1.0 / float(jnp.sqrt(HIDDEN))
    w_ih = jax.random.uniform(ks[0], (4 * HIDDEN, INPUT_SIZE), minval=-s, maxval=s)
    w_hh = jax.random.uniform(ks[1], (4 * HIDDEN, HIDDEN), minval=-s, maxval=s)
    b_ih = jax.random.uniform(ks[2], (4 * HIDDEN,), minval=-s, maxval=s)
    b_hh = jax.random.uniform(ks[3], (4 * HIDDEN,), minval=-s, maxval=s)
    w_out = jax.random.uniform(ks[4], (OUT_DIM, HIDDEN), minval=-s, maxval=s)
    b_out = jax.random.uniform(ks[5], (OUT_DIM,), minval=-s, maxval=s)
    params = (w_ih, w_hh, b_ih, b_hh, w_out, b_out)

    x = jax.random.normal(ks[6], (B, T, INPUT_SIZE), dtype=jnp.float32)

    out = lstm_forward(x, params)
    jax.block_until_ready(out)

    ref = reference_forward(x, params)
    assert out.shape == (B, OUT_DIM)
    # bf16 matmul operands (f32 accumulation) => loosened tolerance vs. the
    # pure-f32 reference.
    assert jnp.allclose(out, ref, atol=2e-2, rtol=2e-2), (out, ref)
    print("KERNEL_OK")
</pallas_src>

<mosaic_0001>
module attributes {stable_mosaic.version = 11 : i64} {
  func.func @lstm_kernel(%arg0: memref<64x10xbf16, #tpu.memory_space<vmem>>, %arg1: memref<10x512xbf16, #tpu.memory_space<vmem>>, %arg2: memref<128x512xbf16, #tpu.memory_space<vmem>>, %arg3: memref<1x512xf32, #tpu.memory_space<vmem>>, %arg4: memref<128x128xbf16, #tpu.memory_space<vmem>>, %arg5: memref<1x128xf32, #tpu.memory_space<vmem>>, %arg6: memref<8x128xf32, #tpu.memory_space<vmem>>, %arg7: memref<64x512xf32, #tpu.memory_space<vmem>>) attributes {dimension_semantics = [], scalar_prefetch = 0 : i64, scratch_operands = 1 : i64, tpu.core_type = #tpu.core_type<tc>} {
    %c0 = arith.constant 0 : index
    %c0_0 = arith.constant 0 : index
    %0 = vector.load %arg0[%c0, %c0_0] : memref<64x10xbf16, #tpu.memory_space<vmem>>, vector<64x10xbf16>
    %c0_1 = arith.constant 0 : index
    %c0_2 = arith.constant 0 : index
    %1 = vector.load %arg1[%c0_1, %c0_2] : memref<10x512xbf16, #tpu.memory_space<vmem>>, vector<10x512xbf16>
    %cst = arith.constant dense<0.000000e+00> : vector<64x512xf32>
    %2 = tpu.matmul %0, %1, %cst {dimension_numbers = #tpu.dot_dimension_numbers<[1], [0], [0], [1], [0, 0, 1, 1], [], []>} : vector<64x10xbf16>, vector<10x512xbf16>, vector<64x512xf32> -> vector<64x512xf32>
    %c0_3 = arith.constant 0 : index
    %c0_4 = arith.constant 0 : index
    %3 = vector.load %arg3[%c0_3, %c0_4] : memref<1x512xf32, #tpu.memory_space<vmem>>, vector<1x512xf32>
    %4 = vector.broadcast %3 : vector<1x512xf32> to vector<64x512xf32>
    %5 = arith.addf %2, %4 : vector<64x512xf32>
    %c0_5 = arith.constant 0 : index
    %c0_6 = arith.constant 0 : index
    %6 = vector.load %arg7[%c0_5, %c0_6] : memref<64x512xf32, #tpu.memory_space<vmem>>, vector<64x512xf32>
    tpu.vector_store %arg7[%c0_5, %c0_6], %5 {strides = array<i32>} : memref<64x512xf32, #tpu.memory_space<vmem>>, vector<64x512xf32>,
    %cst_7 = arith.constant 0.000000e+00 : f32
    %7 = vector.broadcast %cst_7 : f32 to vector<8x128xf32>
    %cst_8 = arith.constant 0.000000e+00 : f32
    %8 = vector.broadcast %cst_8 : f32 to vector<8x128xf32>
    %c0_9 = arith.constant 0 : index
    %c0_10 = arith.constant 0 : index
    %9 = vector.load %arg7[%c0_9, %c0_10] : memref<64x512xf32, #tpu.memory_space<vmem>>, vector<8x512xf32>
    %10 = arith.truncf %7 : vector<8x128xf32> to vector<8x128xbf16>
    %c0_11 = arith.constant 0 : index
    %c0_12 = arith.constant 0 : index
    %11 = vector.load %arg2[%c0_11, %c0_12] : memref<128x512xbf16, #tpu.memory_space<vmem>>, vector<128x512xbf16>
    %cst_13 = arith.constant dense<0.000000e+00> : vector<8x512xf32>
    %12 = tpu.matmul %10, %11, %cst_13 {dimension_numbers = #tpu.dot_dimension_numbers<[1], [0], [0], [1], [0, 0, 1, 1], [], []>} : vector<8x128xbf16>, vector<128x512xbf16>, vector<8x512xf32> -> vector<8x512xf32>
    %13 = arith.addf %9, %12 : vector<8x512xf32>
    %14 = vector.extract_strided_slice %13 {offsets = [0, 0], sizes = [8, 128], strides = [1, 1]} : vector<8x512xf32> to vector<8x128xf32>
    %cst_14 = arith.constant 5.000000e-01 : f32
    %15 = vector.broadcast %cst_14 : f32 to vector<8x128xf32>
    %16 = arith.mulf %15, %14 : vector<8x128xf32>
    %17 = math.tanh %16 : vector<8x128xf32>
    %cst_15 = arith.constant 5.000000e-01 : f32
    %18 = vector.broadcast %cst_15 : f32 to vector<8x128xf32>
    %19 = arith.mulf %18, %17 : vector<8x128xf32>
    %cst_16 = arith.constant 5.000000e-01 : f32
    %20 = vector.broadcast %cst_16 : f32 to vector<8x128xf32>
    %21 = arith.addf %19, %20 : vector<8x128xf32>
    %22 = vector.extract_strided_slice %13 {offsets = [0, 128], sizes = [8, 128], strides = [1, 1]} : vector<8x512xf32> to vector<8x128xf32>
    %cst_17 = arith.constant 5.000000e-01 : f32
    %23 = vector.broadcast %cst_17 : f32 to vector<8x128xf32>
    %24 = arith.mulf %23, %22 : vector<8x128xf32>
    %25 = math.tanh %24 : vector<8x128xf32>
    %cst_18 = arith.constant 5.000000e-01 : f32
    %26 = vector.broadcast %cst_18 : f32 to vector<8x128xf32>
    %27 = arith.mulf %26, %25 : vector<8x128xf32>
    %cst_19 = arith.constant 5.000000e-01 : f32
    %28 = vector.broadcast %cst_19 : f32 to vector<8x128xf32>
    %29 = arith.addf %27, %28 : vector<8x128xf32>
    %30 = vector.extract_strided_slice %13 {offsets = [0, 256], sizes = [8, 128], strides = [1, 1]} : vector<8x512xf32> to vector<8x128xf32>
    %31 = math.tanh %30 : vector<8x128xf32>
    %32 = vector.extract_strided_slice %13 {offsets = [0, 384], sizes = [8, 128], strides = [1, 1]} : vector<8x512xf32> to vector<8x128xf32>
    %cst_20 = arith.constant 5.000000e-01 : f32
    %33 = vector.broadcast %cst_20 : f32 to vector<8x128xf32>
    %34 = arith.mulf %33, %32 : vector<8x128xf32>
    %35 = math.tanh %34 : vector<8x128xf32>
    %cst_21 = arith.constant 5.000000e-01 : f32
    %36 = vector.broadcast %cst_21 : f32 to vector<8x128xf32>
    %37 = arith.mulf %36, %35 : vector<8x128xf32>
    %cst_22 = arith.constant 5.000000e-01 : f32
    %38 = vector.broadcast %cst_22 : f32 to vector<8x128xf32>
    %39 = arith.addf %37, %38 : vector<8x128xf32>
    %40 = arith.mulf %29, %8 : vector<8x128xf32>
    %41 = arith.mulf %21, %31 : vector<8x128xf32>
    %42 = arith.addf %40, %41 : vector<8x128xf32>
    %43 = math.tanh %42 : vector<8x128xf32>
    %44 = arith.mulf %39, %43 : vector<8x128xf32>
    %c8 = arith.constant 8 : index
    %c0_23 = arith.constant 0 : index
    %45 = vector.load %arg7[%c8, %c0_23] : memref<64x512xf32, #tpu.memory_space<vmem>>, vector<8x512xf32>
    %46 = arith.truncf %44 : vector<8x128xf32> to vector<8x128xbf16>
    %c0_24 = arith.constant 0 : index
    %c0_25 = arith.constant 0 : index
    %47 = vector.load %arg2[%c0_24, %c0_25] : memref<128x512xbf16, #tpu.memory_space<vmem>>, vector<128x512xbf16>
    %cst_26 = arith.constant dense<0.000000e+00> : vector<8x512xf32>
    %48 = tpu.matmul %46, %47, %cst_26 {dimension_numbers = #tpu.dot_dimension_numbers<[1], [0], [0], [1], [0, 0, 1, 1], [], []>} : vector<8x128xbf16>, vector<128x512xbf16>, vector<8x512xf32> -> vector<8x512xf32>
    %49 = arith.addf %45, %48 : vector<8x512xf32>
    %50 = vector.extract_strided_slice %49 {offsets = [0, 0], sizes = [8, 128], strides = [1, 1]} : vector<8x512xf32> to vector<8x128xf32>
    %cst_27 = arith.constant 5.000000e-01 : f32
    %51 = vector.broadcast %cst_27 : f32 to vector<8x128xf32>
    %52 = arith.mulf %51, %50 : vector<8x128xf32>
    %53 = math.tanh %52 : vector<8x128xf32>
    %cst_28 = arith.constant 5.000000e-01 : f32
    %54 = vector.broadcast %cst_28 : f32 to vector<8x128xf32>
    %55 = arith.mulf %54, %53 : vector<8x128xf32>
    %cst_29 = arith.constant 5.000000e-01 : f32
    %56 = vector.broadcast %cst_29 : f32 to vector<8x128xf32>
    %57 = arith.addf %55, %56 : vector<8x128xf32>
    %58 = vector.extract_strided_slice %49 {offsets = [0, 128], sizes = [8, 128], strides = [1, 1]} : vector<8x512xf32> to vector<8x128xf32>
    %cst_30 = arith.constant 5.000000e-01 : f32
    %59 = vector.broadcast %cst_30 : f32 to vector<8x128xf32>
    %60 = arith.mulf %59, %58 : vector<8x128xf32>
    %61 = math.tanh %60 : vector<8x128xf32>
    %cst_31 = arith.constant 5.000000e-01 : f32
    %62 = vector.broadcast %cst_31 : f32 to vector<8x128xf32>
    %63 = arith.mulf %62, %61 : vector<8x128xf32>
    %cst_32 = arith.constant 5.000000e-01 : f32
    %64 = vector.broadcast %cst_32 : f32 to vector<8x128xf32>
    %65 = arith.addf %63, %64 : vector<8x128xf32>
    %66 = vector.extract_strided_slice %49 {offsets = [0, 256], sizes = [8, 128], strides = [1, 1]} : vector<8x512xf32> to vector<8x128xf32>
    %67 = math.tanh %66 : vector<8x128xf32>
    %68 = vector.extract_strided_slice %49 {offsets = [0, 384], sizes = [8, 128], strides = [1, 1]} : vector<8x512xf32> to vector<8x128xf32>
    %cst_33 = arith.constant 5.000000e-01 : f32
    %69 = vector.broadcast %cst_33 : f32 to vector<8x128xf32>
    %70 = arith.mulf %69, %68 : vector<8x128xf32>
    %71 = math.tanh %70 : vector<8x128xf32>
    %cst_34 = arith.constant 5.000000e-01 : f32
    %72 = vector.broadcast %cst_34 : f32 to vector<8x128xf32>
    %73 = arith.mulf %72, %71 : vector<8x128xf32>
    %cst_35 = arith.constant 5.000000e-01 : f32
    %74 = vector.broadcast %cst_35 : f32 to vector<8x128xf32>
    %75 = arith.addf %73, %74 : vector<8x128xf32>
    %76 = arith.mulf %65, %42 : vector<8x128xf32>
    %77 = arith.mulf %57, %67 : vector<8x128xf32>
    %78 = arith.addf %76, %77 : vector<8x128xf32>
    %79 = math.tanh %78 : vector<8x128xf32>
    %80 = arith.mulf %75, %79 : vector<8x128xf32>
    %c16 = arith.constant 16 : index
    %c0_36 = arith.constant 0 : index
    %81 = vector.load %arg7[%c16, %c0_36] : memref<64x512xf32, #tpu.memory_space<vmem>>, vector<8x512xf32>
    %82 = arith.truncf %80 : vector<8x128xf32> to vector<8x128xbf16>
    %c0_37 = arith.constant 0 : index
    %c0_38 = arith.constant 0 : index
    %83 = vector.load %arg2[%c0_37, %c0_38] : memref<128x512xbf16, #tpu.memory_space<vmem>>, vector<128x512xbf16>
    %cst_39 = arith.constant dense<0.000000e+00> : vector<8x512xf32>
    %84 = tpu.matmul %82, %83, %cst_39 {dimension_numbers = #tpu.dot_dimension_numbers<[1], [0], [0], [1], [0, 0, 1, 1], [], []>} : vector<8x128xbf16>, vector<128x512xbf16>, vector<8x512xf32> -> vector<8x512xf32>
    %85 = arith.addf %81, %84 : vector<8x512xf32>
    %86 = vector.extract_strided_slice %85 {offsets = [0, 0], sizes = [8, 128], strides = [1, 1]} : vector<8x512xf32> to vector<8x128xf32>
    %cst_40 = arith.constant 5.000000e-01 : f32
    %87 = vector.broadcast %cst_40 : f32 to vector<8x128xf32>
    %88 = arith.mulf %87, %86 : vector<8x128xf32>
    %89 = math.tanh %88 : vector<8x128xf32>
    %cst_41 = arith.constant 5.000000e-01 : f32
    %90 = vector.broadcast %cst_41 : f32 to vector<8x128xf32>
    %91 = arith.mulf %90, %89 : vector<8x128xf32>
    %cst_42 = arith.constant 5.000000e-01 : f32
    %92 = vector.broadcast %cst_42 : f32 to vector<8x128xf32>
    %93 = arith.addf %91, %92 : vector<8x128xf32>
    %94 = vector.extract_strided_slice %85 {offsets = [0, 128], sizes = [8, 128], strides = [1, 1]} : vector<8x512xf32> to vector<8x128xf32>
    %cst_43 = arith.constant 5.000000e-01 : f32
    %95 = vector.broadcast %cst_43 : f32 to vector<8x128xf32>
    %96 = arith.mulf %95, %94 : vector<8x128xf32>
    %97 = math.tanh %96 : vector<8x128xf32>
    %cst_44 = arith.constant 5.000000e-01 : f32
    %98 = vector.broadcast %cst_44 : f32 to vector<8x128xf32>
    %99 = arith.mulf %98, %97 : vector<8x128xf32>
    %cst_45 = arith.constant 5.000000e-01 : f32
    %100 = vector.broadcast %cst_45 : f32 to vector<8x128xf32>
    %101 = arith.addf %99, %100 : vector<8x128xf32>
    %102 = vector.extract_strided_slice %85 {offsets = [0, 256], sizes = [8, 128], strides = [1, 1]} : vector<8x512xf32> to vector<8x128xf32>
    %103 = math.tanh %102 : vector<8x128xf32>
    %104 = vector.extract_strided_slice %85 {offsets = [0, 384], sizes = [8, 128], strides = [1, 1]} : vector<8x512xf32> to vector<8x128xf32>
    %cst_46 = arith.constant 5.000000e-01 : f32
    %105 = vector.broadcast %cst_46 : f32 to vector<8x128xf32>
    %106 = arith.mulf %105, %104 : vector<8x128xf32>
    %107 = math.tanh %106 : vector<8x128xf32>
    %cst_47 = arith.constant 5.000000e-01 : f32
    %108 = vector.broadcast %cst_47 : f32 to vector<8x128xf32>
    %109 = arith.mulf %108, %107 : vector<8x128xf32>
    %cst_48 = arith.constant 5.000000e-01 : f32
    %110 = vector.broadcast %cst_48 : f32 to vector<8x128xf32>
    %111 = arith.addf %109, %110 : vector<8x128xf32>
    %112 = arith.mulf %101, %78 : vector<8x128xf32>
    %113 = arith.mulf %93, %103 : vector<8x128xf32>
    %114 = arith.addf %112, %113 : vector<8x128xf32>
    %115 = math.tanh %114 : vector<8x128xf32>
    %116 = arith.mulf %111, %115 : vector<8x128xf32>
    %c24 = arith.constant 24 : index
    %c0_49 = arith.constant 0 : index
    %117 = vector.load %arg7[%c24, %c0_49] : memref<64x512xf32, #tpu.memory_space<vmem>>, vector<8x512xf32>
    %118 = arith.truncf %116 : vector<8x128xf32> to vector<8x128xbf16>
    %c0_50 = arith.constant 0 : index
    %c0_51 = arith.constant 0 : index
    %119 = vector.load %arg2[%c0_50, %c0_51] : memref<128x512xbf16, #tpu.memory_space<vmem>>, vector<128x512xbf16>
    %cst_52 = arith.constant dense<0.000000e+00> : vector<8x512xf32>
    %120 = tpu.matmul %118, %119, %cst_52 {dimension_numbers = #tpu.dot_dimension_numbers<[1], [0], [0], [1], [0, 0, 1, 1], [], []>} : vector<8x128xbf16>, vector<128x512xbf16>, vector<8x512xf32> -> vector<8x512xf32>
    %121 = arith.addf %117, %120 : vector<8x512xf32>
    %122 = vector.extract_strided_slice %121 {offsets = [0, 0], sizes = [8, 128], strides = [1, 1]} : vector<8x512xf32> to vector<8x128xf32>
    %cst_53 = arith.constant 5.000000e-01 : f32
    %123 = vector.broadcast %cst_53 : f32 to vector<8x128xf32>
    %124 = arith.mulf %123, %122 : vector<8x128xf32>
    %125 = math.tanh %124 : vector<8x128xf32>
    %cst_54 = arith.constant 5.000000e-01 : f32
    %126 = vector.broadcast %cst_54 : f32 to vector<8x128xf32>
    %127 = arith.mulf %126, %125 : vector<8x128xf32>
    %cst_55 = arith.constant 5.000000e-01 : f32
    %128 = vector.broadcast %cst_55 : f32 to vector<8x128xf32>
    %129 = arith.addf %127, %128 : vector<8x128xf32>
    %130 = vector.extract_strided_slice %121 {offsets = [0, 128], sizes = [8, 128], strides = [1, 1]} : vector<8x512xf32> to vector<8x128xf32>
    %cst_56 = arith.constant 5.000000e-01 : f32
    %131 = vector.broadcast %cst_56 : f32 to vector<8x128xf32>
    %132 = arith.mulf %131, %130 : vector<8x128xf32>
    %133 = math.tanh %132 : vector<8x128xf32>
    %cst_57 = arith.constant 5.000000e-01 : f32
    %134 = vector.broadcast %cst_57 : f32 to vector<8x128xf32>
    %135 = arith.mulf %134, %133 : vector<8x128xf32>
    %cst_58 = arith.constant 5.000000e-01 : f32
    %136 = vector.broadcast %cst_58 : f32 to vector<8x128xf32>
    %137 = arith.addf %135, %136 : vector<8x128xf32>
    %138 = vector.extract_strided_slice %121 {offsets = [0, 256], sizes = [8, 128], strides = [1, 1]} : vector<8x512xf32> to vector<8x128xf32>
    %139 = math.tanh %138 : vector<8x128xf32>
    %140 = vector.extract_strided_slice %121 {offsets = [0, 384], sizes = [8, 128], strides = [1, 1]} : vector<8x512xf32> to vector<8x128xf32>
    %cst_59 = arith.constant 5.000000e-01 : f32
    %141 = vector.broadcast %cst_59 : f32 to vector<8x128xf32>
    %142 = arith.mulf %141, %140 : vector<8x128xf32>
    %143 = math.tanh %142 : vector<8x128xf32>
    %cst_60 = arith.constant 5.000000e-01 : f32
    %144 = vector.broadcast %cst_60 : f32 to vector<8x128xf32>
    %145 = arith.mulf %144, %143 : vector<8x128xf32>
    %cst_61 = arith.constant 5.000000e-01 : f32
    %146 = vector.broadcast %cst_61 : f32 to vector<8x128xf32>
    %147 = arith.addf %145, %146 : vector<8x128xf32>
    %148 = arith.mulf %137, %114 : vector<8x128xf32>
    %149 = arith.mulf %129, %139 : vector<8x128xf32>
    %150 = arith.addf %148, %149 : vector<8x128xf32>
    %151 = math.tanh %150 : vector<8x128xf32>
    %152 = arith.mulf %147, %151 : vector<8x128xf32>
    %c32 = arith.constant 32 : index
    %c0_62 = arith.constant 0 : index
    %153 = vector.load %arg7[%c32, %c0_62] : memref<64x512xf32, #tpu.memory_space<vmem>>, vector<8x512xf32>
    %154 = arith.truncf %152 : vector<8x128xf32> to vector<8x128xbf16>
    %c0_63 = arith.constant 0 : index
    %c0_64 = arith.constant 0 : index
    %155 = vector.load %arg2[%c0_63, %c0_64] : memref<128x512xbf16, #tpu.memory_space<vmem>>, vector<128x512xbf16>
    %cst_65 = arith.constant dense<0.000000e+00> : vector<8x512xf32>
    %156 = tpu.matmul %154, %155, %cst_65 {dimension_numbers = #tpu.dot_dimension_numbers<[1], [0], [0], [1], [0, 0, 1, 1], [], []>} : vector<8x128xbf16>, vector<128x512xbf16>, vector<8x512xf32> -> vector<8x512xf32>
    %157 = arith.addf %153, %156 : vector<8x512xf32>
    %158 = vector.extract_strided_slice %157 {offsets = [0, 0], sizes = [8, 128], strides = [1, 1]} : vector<8x512xf32> to vector<8x128xf32>
    %cst_66 = arith.constant 5.000000e-01 : f32
    %159 = vector.broadcast %cst_66 : f32 to vector<8x128xf32>
    %160 = arith.mulf %159, %158 : vector<8x128xf32>
    %161 = math.tanh %160 : vector<8x128xf32>
    %cst_67 = arith.constant 5.000000e-01 : f32
    %162 = vector.broadcast %cst_67 : f32 to vector<8x128xf32>
    %163 = arith.mulf %162, %161 : vector<8x128xf32>
    %cst_68 = arith.constant 5.000000e-01 : f32
    %164 = vector.broadcast %cst_68 : f32 to vector<8x128xf32>
    %165 = arith.addf %163, %164 : vector<8x128xf32>
    %166 = vector.extract_strided_slice %157 {offsets = [0, 128], sizes = [8, 128], strides = [1, 1]} : vector<8x512xf32> to vector<8x128xf32>
    %cst_69 = arith.constant 5.000000e-01 : f32
    %167 = vector.broadcast %cst_69 : f32 to vector<8x128xf32>
    %168 = arith.mulf %167, %166 : vector<8x128xf32>
    %169 = math.tanh %168 : vector<8x128xf32>
    %cst_70 = arith.constant 5.000000e-01 : f32
    %170 = vector.broadcast %cst_70 : f32 to vector<8x128xf32>
    %171 = arith.mulf %170, %169 : vector<8x128xf32>
    %cst_71 = arith.constant 5.000000e-01 : f32
    %172 = vector.broadcast %cst_71 : f32 to vector<8x128xf32>
    %173 = arith.addf %171, %172 : vector<8x128xf32>
    %174 = vector.extract_strided_slice %157 {offsets = [0, 256], sizes = [8, 128], strides = [1, 1]} : vector<8x512xf32> to vector<8x128xf32>
    %175 = math.tanh %174 : vector<8x128xf32>
    %176 = vector.extract_strided_slice %157 {offsets = [0, 384], sizes = [8, 128], strides = [1, 1]} : vector<8x512xf32> to vector<8x128xf32>
    %cst_72 = arith.constant 5.000000e-01 : f32
    %177 = vector.broadcast %cst_72 : f32 to vector<8x128xf32>
    %178 = arith.mulf %177, %176 : vector<8x128xf32>
    %179 = math.tanh %178 : vector<8x128xf32>
    %cst_73 = arith.constant 5.000000e-01 : f32
    %180 = vector.broadcast %cst_73 : f32 to vector<8x128xf32>
    %181 = arith.mulf %180, %179 : vector<8x128xf32>
    %cst_74 = arith.constant 5.000000e-01 : f32
    %182 = vector.broadcast %cst_74 : f32 to vector<8x128xf32>
    %183 = arith.addf %181, %182 : vector<8x128xf32>
    %184 = arith.mulf %173, %150 : vector<8x128xf32>
    %185 = arith.mulf %165, %175 : vector<8x128xf32>
    %186 = arith.addf %184, %185 : vector<8x128xf32>
    %187 = math.tanh %186 : vector<8x128xf32>
    %188 = arith.mulf %183, %187 : vector<8x128xf32>
    %c40 = arith.constant 40 : index
    %c0_75 = arith.constant 0 : index
    %189 = vector.load %arg7[%c40, %c0_75] : memref<64x512xf32, #tpu.memory_space<vmem>>, vector<8x512xf32>
    %190 = arith.truncf %188 : vector<8x128xf32> to vector<8x128xbf16>
    %c0_76 = arith.constant 0 : index
    %c0_77 = arith.constant 0 : index
    %191 = vector.load %arg2[%c0_76, %c0_77] : memref<128x512xbf16, #tpu.memory_space<vmem>>, vector<128x512xbf16>
    %cst_78 = arith.constant dense<0.000000e+00> : vector<8x512xf32>
    %192 = tpu.matmul %190, %191, %cst_78 {dimension_numbers = #tpu.dot_dimension_numbers<[1], [0], [0], [1], [0, 0, 1, 1], [], []>} : vector<8x128xbf16>, vector<128x512xbf16>, vector<8x512xf32> -> vector<8x512xf32>
    %193 = arith.addf %189, %192 : vector<8x512xf32>
    %194 = vector.extract_strided_slice %193 {offsets = [0, 0], sizes = [8, 128], strides = [1, 1]} : vector<8x512xf32> to vector<8x128xf32>
    %cst_79 = arith.constant 5.000000e-01 : f32
    %195 = vector.broadcast %cst_79 : f32 to vector<8x128xf32>
    %196 = arith.mulf %195, %194 : vector<8x128xf32>
    %197 = math.tanh %196 : vector<8x128xf32>
    %cst_80 = arith.constant 5.000000e-01 : f32
    %198 = vector.broadcast %cst_80 : f32 to vector<8x128xf32>
    %199 = arith.mulf %198, %197 : vector<8x128xf32>
    %cst_81 = arith.constant 5.000000e-01 : f32
    %200 = vector.broadcast %cst_81 : f32 to vector<8x128xf32>
    %201 = arith.addf %199, %200 : vector<8x128xf32>
    %202 = vector.extract_strided_slice %193 {offsets = [0, 128], sizes = [8, 128], strides = [1, 1]} : vector<8x512xf32> to vector<8x128xf32>
    %cst_82 = arith.constant 5.000000e-01 : f32
    %203 = vector.broadcast %cst_82 : f32 to vector<8x128xf32>
    %204 = arith.mulf %203, %202 : vector<8x128xf32>
    %205 = math.tanh %204 : vector<8x128xf32>
    %cst_83 = arith.constant 5.000000e-01 : f32
    %206 = vector.broadcast %cst_83 : f32 to vector<8x128xf32>
    %207 = arith.mulf %206, %205 : vector<8x128xf32>
    %cst_84 = arith.constant 5.000000e-01 : f32
    %208 = vector.broadcast %cst_84 : f32 to vector<8x128xf32>
    %209 = arith.addf %207, %208 : vector<8x128xf32>
    %210 = vector.extract_strided_slice %193 {offsets = [0, 256], sizes = [8, 128], strides = [1, 1]} : vector<8x512xf32> to vector<8x128xf32>
    %211 = math.tanh %210 : vector<8x128xf32>
    %212 = vector.extract_strided_slice %193 {offsets = [0, 384], sizes = [8, 128], strides = [1, 1]} : vector<8x512xf32> to vector<8x128xf32>
    %cst_85 = arith.constant 5.000000e-01 : f32
    %213 = vector.broadcast %cst_85 : f32 to vector<8x128xf32>
    %214 = arith.mulf %213, %212 : vector<8x128xf32>
    %215 = math.tanh %214 : vector<8x128xf32>
    %cst_86 = arith.constant 5.000000e-01 : f32
    %216 = vector.broadcast %cst_86 : f32 to vector<8x128xf32>
    %217 = arith.mulf %216, %215 : vector<8x128xf32>
    %cst_87 = arith.constant 5.000000e-01 : f32
    %218 = vector.broadcast %cst_87 : f32 to vector<8x128xf32>
    %219 = arith.addf %217, %218 : vector<8x128xf32>
    %220 = arith.mulf %209, %186 : vector<8x128xf32>
    %221 = arith.mulf %201, %211 : vector<8x128xf32>
    %222 = arith.addf %220, %221 : vector<8x128xf32>
    %223 = math.tanh %222 : vector<8x128xf32>
    %224 = arith.mulf %219, %223 : vector<8x128xf32>
    %c48 = arith.constant 48 : index
    %c0_88 = arith.constant 0 : index
    %225 = vector.load %arg7[%c48, %c0_88] : memref<64x512xf32, #tpu.memory_space<vmem>>, vector<8x512xf32>
    %226 = arith.truncf %224 : vector<8x128xf32> to vector<8x128xbf16>
    %c0_89 = arith.constant 0 : index
    %c0_90 = arith.constant 0 : index
    %227 = vector.load %arg2[%c0_89, %c0_90] : memref<128x512xbf16, #tpu.memory_space<vmem>>, vector<128x512xbf16>
    %cst_91 = arith.constant dense<0.000000e+00> : vector<8x512xf32>
    %228 = tpu.matmul %226, %227, %cst_91 {dimension_numbers = #tpu.dot_dimension_numbers<[1], [0], [0], [1], [0, 0, 1, 1], [], []>} : vector<8x128xbf16>, vector<128x512xbf16>, vector<8x512xf32> -> vector<8x512xf32>
    %229 = arith.addf %225, %228 : vector<8x512xf32>
    %230 = vector.extract_strided_slice %229 {offsets = [0, 0], sizes = [8, 128], strides = [1, 1]} : vector<8x512xf32> to vector<8x128xf32>
    %cst_92 = arith.constant 5.000000e-01 : f32
    %231 = vector.broadcast %cst_92 : f32 to vector<8x128xf32>
    %232 = arith.mulf %231, %230 : vector<8x128xf32>
    %233 = math.tanh %232 : vector<8x128xf32>
    %cst_93 = arith.constant 5.000000e-01 : f32
    %234 = vector.broadcast %cst_93 : f32 to vector<8x128xf32>
    %235 = arith.mulf %234, %233 : vector<8x128xf32>
    %cst_94 = arith.constant 5.000000e-01 : f32
    %236 = vector.broadcast %cst_94 : f32 to vector<8x128xf32>
    %237 = arith.addf %235, %236 : vector<8x128xf32>
    %238 = vector.extract_strided_slice %229 {offsets = [0, 128], sizes = [8, 128], strides = [1, 1]} : vector<8x512xf32> to vector<8x128xf32>
    %cst_95 = arith.constant 5.000000e-01 : f32
    %239 = vector.broadcast %cst_95 : f32 to vector<8x128xf32>
    %240 = arith.mulf %239, %238 : vector<8x128xf32>
    %241 = math.tanh %240 : vector<8x128xf32>
    %cst_96 = arith.constant 5.000000e-01 : f32
    %242 = vector.broadcast %cst_96 : f32 to vector<8x128xf32>
    %243 = arith.mulf %242, %241 : vector<8x128xf32>
    %cst_97 = arith.constant 5.000000e-01 : f32
    %244 = vector.broadcast %cst_97 : f32 to vector<8x128xf32>
    %245 = arith.addf %243, %244 : vector<8x128xf32>
    %246 = vector.extract_strided_slice %229 {offsets = [0, 256], sizes = [8, 128], strides = [1, 1]} : vector<8x512xf32> to vector<8x128xf32>
    %247 = math.tanh %246 : vector<8x128xf32>
    %248 = vector.extract_strided_slice %229 {offsets = [0, 384], sizes = [8, 128], strides = [1, 1]} : vector<8x512xf32> to vector<8x128xf32>
    %cst_98 = arith.constant 5.000000e-01 : f32
    %249 = vector.broadcast %cst_98 : f32 to vector<8x128xf32>
    %250 = arith.mulf %249, %248 : vector<8x128xf32>
    %251 = math.tanh %250 : vector<8x128xf32>
    %cst_99 = arith.constant 5.000000e-01 : f32
    %252 = vector.broadcast %cst_99 : f32 to vector<8x128xf32>
    %253 = arith.mulf %252, %251 : vector<8x128xf32>
    %cst_100 = arith.constant 5.000000e-01 : f32
    %254 = vector.broadcast %cst_100 : f32 to vector<8x128xf32>
    %255 = arith.addf %253, %254 : vector<8x128xf32>
    %256 = arith.mulf %245, %222 : vector<8x128xf32>
    %257 = arith.mulf %237, %247 : vector<8x128xf32>
    %258 = arith.addf %256, %257 : vector<8x128xf32>
    %259 = math.tanh %258 : vector<8x128xf32>
    %260 = arith.mulf %255, %259 : vector<8x128xf32>
    %c56 = arith.constant 56 : index
    %c0_101 = arith.constant 0 : index
    %261 = vector.load %arg7[%c56, %c0_101] : memref<64x512xf32, #tpu.memory_space<vmem>>, vector<8x512xf32>
    %262 = arith.truncf %260 : vector<8x128xf32> to vector<8x128xbf16>
    %c0_102 = arith.constant 0 : index
    %c0_103 = arith.constant 0 : index
    %263 = vector.load %arg2[%c0_102, %c0_103] : memref<128x512xbf16, #tpu.memory_space<vmem>>, vector<128x512xbf16>
    %cst_104 = arith.constant dense<0.000000e+00> : vector<8x512xf32>
    %264 = tpu.matmul %262, %263, %cst_104 {dimension_numbers = #tpu.dot_dimension_numbers<[1], [0], [0], [1], [0, 0, 1, 1], [], []>} : vector<8x128xbf16>, vector<128x512xbf16>, vector<8x512xf32> -> vector<8x512xf32>
    %265 = arith.addf %261, %264 : vector<8x512xf32>
    %266 = vector.extract_strided_slice %265 {offsets = [0, 0], sizes = [8, 128], strides = [1, 1]} : vector<8x512xf32> to vector<8x128xf32>
    %cst_105 = arith.constant 5.000000e-01 : f32
    %267 = vector.broadcast %cst_105 : f32 to vector<8x128xf32>
    %268 = arith.mulf %267, %266 : vector<8x128xf32>
    %269 = math.tanh %268 : vector<8x128xf32>
    %cst_106 = arith.constant 5.000000e-01 : f32
    %270 = vector.broadcast %cst_106 : f32 to vector<8x128xf32>
    %271 = arith.mulf %270, %269 : vector<8x128xf32>
    %cst_107 = arith.constant 5.000000e-01 : f32
    %272 = vector.broadcast %cst_107 : f32 to vector<8x128xf32>
    %273 = arith.addf %271, %272 : vector<8x128xf32>
    %274 = vector.extract_strided_slice %265 {offsets = [0, 128], sizes = [8, 128], strides = [1, 1]} : vector<8x512xf32> to vector<8x128xf32>
    %cst_108 = arith.constant 5.000000e-01 : f32
    %275 = vector.broadcast %cst_108 : f32 to vector<8x128xf32>
    %276 = arith.mulf %275, %274 : vector<8x128xf32>
    %277 = math.tanh %276 : vector<8x128xf32>
    %cst_109 = arith.constant 5.000000e-01 : f32
    %278 = vector.broadcast %cst_109 : f32 to vector<8x128xf32>
    %279 = arith.mulf %278, %277 : vector<8x128xf32>
    %cst_110 = arith.constant 5.000000e-01 : f32
    %280 = vector.broadcast %cst_110 : f32 to vector<8x128xf32>
    %281 = arith.addf %279, %280 : vector<8x128xf32>
    %282 = vector.extract_strided_slice %265 {offsets = [0, 256], sizes = [8, 128], strides = [1, 1]} : vector<8x512xf32> to vector<8x128xf32>
    %283 = math.tanh %282 : vector<8x128xf32>
    %284 = vector.extract_strided_slice %265 {offsets = [0, 384], sizes = [8, 128], strides = [1, 1]} : vector<8x512xf32> to vector<8x128xf32>
    %cst_111 = arith.constant 5.000000e-01 : f32
    %285 = vector.broadcast %cst_111 : f32 to vector<8x128xf32>
    %286 = arith.mulf %285, %284 : vector<8x128xf32>
    %287 = math.tanh %286 : vector<8x128xf32>
    %cst_112 = arith.constant 5.000000e-01 : f32
    %288 = vector.broadcast %cst_112 : f32 to vector<8x128xf32>
    %289 = arith.mulf %288, %287 : vector<8x128xf32>
    %cst_113 = arith.constant 5.000000e-01 : f32
    %290 = vector.broadcast %cst_113 : f32 to vector<8x128xf32>
    %291 = arith.addf %289, %290 : vector<8x128xf32>
    %292 = arith.mulf %281, %258 : vector<8x128xf32>
    %293 = arith.mulf %273, %283 : vector<8x128xf32>
    %294 = arith.addf %292, %293 : vector<8x128xf32>
    %295 = math.tanh %294 : vector<8x128xf32>
    %296 = arith.mulf %291, %295 : vector<8x128xf32>
    %297 = arith.truncf %296 : vector<8x128xf32> to vector<8x128xbf16>
    %c0_114 = arith.constant 0 : index
    %c0_115 = arith.constant 0 : index
    %298 = vector.load %arg4[%c0_114, %c0_115] : memref<128x128xbf16, #tpu.memory_space<vmem>>, vector<128x128xbf16>
    %cst_116 = arith.constant dense<0.000000e+00> : vector<8x128xf32>
    %299 = tpu.matmul %297, %298, %cst_116 {dimension_numbers = #tpu.dot_dimension_numbers<[1], [0], [0], [1], [0, 0, 1, 1], [], []>} : vector<8x128xbf16>, vector<128x128xbf16>, vector<8x128xf32> -> vector<8x128xf32>
    %c0_117 = arith.constant 0 : index
    %c0_118 = arith.constant 0 : index
    %300 = vector.load %arg5[%c0_117, %c0_118] : memref<1x128xf32, #tpu.memory_space<vmem>>, vector<1x128xf32>
    %301 = vector.broadcast %300 : vector<1x128xf32> to vector<8x128xf32>
    %302 = arith.addf %299, %301 : vector<8x128xf32>
    %c0_119 = arith.constant 0 : index
    %c0_120 = arith.constant 0 : index
    %303 = vector.load %arg6[%c0_119, %c0_120] : memref<8x128xf32, #tpu.memory_space<vmem>>, vector<8x128xf32>
    tpu.vector_store %arg6[%c0_119, %c0_120], %302 {strides = array<i32>} : memref<8x128xf32, #tpu.memory_space<vmem>>, vector<8x128xf32>,
    return
  }
}

</mosaic_0001>

<llo_original>
// kernel: tpu_custom_call.1
$region0: #{tpu_custom_call.1}
  #allocation0 [shape = 'u32[]', space=smem, size = 0x4, offset = 0x4, fixed_abs, tag = 'smem constant byte address 0x4 - core index']
  #allocation1 [shape = 'u32[144,128]{1,0:T(1,128)}', space=vmem, size = 0x12000, scoped, tag = 'internal scratch']
  #allocation2 [shape = 'f32[64,512]{1,0:T(8,128)}', space=vmem, size = 0x20000, scoped, tag = 'scratch operand']
  %s0 = inlined_call_operand.vmem [shape: bf16[64,10], index: 0, kind: input, shape index: {}]
  %s1 = inlined_call_operand.vmem [shape: bf16[10,512], index: 1, kind: input, shape index: {}]
  %s2 = inlined_call_operand.hbm [shape: bf16[128,512], index: 2, kind: input, shape index: {}]
  %s3 = inlined_call_operand.vmem [shape: f32[1,512], index: 3, kind: input, shape index: {}]
  %s4 = inlined_call_operand.hbm [shape: bf16[128,128], index: 4, kind: input, shape index: {}]
  %s5 = inlined_call_operand.vmem [shape: f32[1,128], index: 5, kind: input, shape index: {}]
  %s6 = inlined_call_operand.hbm [shape: f32[8,128], index: 6, kind: output, shape index: {}]
  %s7 = sld [smem:[#allocation0]]
  $region42: #{tpu_custom_call.1} parent=0
    _
  %s9 = ssub.s32 1, %s7
  %s10 = scalar_select 0, %s9, %s7
  $region1: #{tpu_custom_call.1} parent=0
    #allocation3 [shape = 'u8[131072]{0}', space=vmem, size = 0x20000, scoped, tag = 'input window, operand 2, single buffered']
    #allocation4 [shape = 's32[1]{0}', space=sflag, size = 0x4, scoped, tag = 'scoped memory for tpu_custom_call.1']
    #allocation5 [shape = 's32[1]{0}', space=sflag, size = 0x4, scoped, tag = 'scoped memory for tpu_custom_call.1']
    #allocation6 [shape = 'u8[32768]{0}', space=vmem, size = 0x8000, scoped, tag = 'input window, operand 4, single buffered']
    #allocation7 [shape = 's32[1]{0}', space=sflag, size = 0x4, scoped, tag = 'scoped memory for tpu_custom_call.1']
    #allocation8 [shape = 'u8[4096]{0}', space=vmem, size = 0x1000, scoped, tag = 'output window, operand 0, single buffered']
    %11 = vsyncpa [#allocation4], 0
    %12 = vsyncpa [#allocation7], 0
    %13 = vsyncpa [#allocation5], 0
    // Predicated region
    $region2: #{tpu_custom_call.1} parent=1 // pred_check
      _
    $region3: #{tpu_custom_call.1} parent=1 // pred_check_branch
      %15 = sbr.rel (0) target = $region5
    $region4: #{tpu_custom_call.1} parent=1 // pred_region
      _
    $region5: #{tpu_custom_call.1} parent=1 // pred_fallthru
      _
    // Predicated region
    $region6: #{tpu_custom_call.1} parent=1 // pred_check
      _
    $region7: #{tpu_custom_call.1} parent=1 // pred_check_branch
      %17 = sbr.rel (0) target = $region9
    $region8: #{tpu_custom_call.1} parent=1 // pred_region
      _
    $region9: #{tpu_custom_call.1} parent=1 // pred_fallthru
      _
    // Predicated region
    $region10: #{tpu_custom_call.1} parent=1 // pred_check
      _
    $region11: #{tpu_custom_call.1} parent=1 // pred_check_branch
      %19 = sbr.rel (0) target = $region13
    $region12: #{tpu_custom_call.1} parent=1 // pred_region
      %s21 = ssub.s32 4096, 4096
      %22 = vsyncadd [#allocation4], %s21
      %s23 = sshll.u32 [#allocation3], 4
      %s24 = int_to_ptr.vmem [resolvable:$true] %s23
      %29 = dma.hbm_to_vmem [thread:$0]  %s2, 4096, %s24, [#allocation4], 256, 256, 16
    $region13: #{tpu_custom_call.1} parent=1 // pred_fallthru
      _
    // Predicated region
    $region14: #{tpu_custom_call.1} parent=1 // pred_check
      _
    $region15: #{tpu_custom_call.1} parent=1 // pred_check_branch
      %31 = sbr.rel (0) target = $region17
    $region16: #{tpu_custom_call.1} parent=1 // pred_region
      _
    $region17: #{tpu_custom_call.1} parent=1 // pred_fallthru
      _
    // Predicated region
    $region18: #{tpu_custom_call.1} parent=1 // pred_check
      _
    $region19: #{tpu_custom_call.1} parent=1 // pred_check_branch
      %33 = sbr.rel (0) target = $region21
    $region20: #{tpu_custom_call.1} parent=1 // pred_region
      %s35 = ssub.s32 1024, 1024
      %36 = vsyncadd [#allocation7], %s35
      %s37 = sshll.u32 [#allocation6], 4
      %s38 = int_to_ptr.vmem [resolvable:$true] %s37
      %43 = dma.hbm_to_vmem [thread:$0]  %s4, 1024, %s38, [#allocation7], 64, 64, 4
    $region21: #{tpu_custom_call.1} parent=1 // pred_fallthru
      _
    // Predicated region
    $region22: #{tpu_custom_call.1} parent=1 // pred_check
      _
    $region23: #{tpu_custom_call.1} parent=1 // pred_check_branch
      %45 = sbr.rel (0) target = $region25
    $region24: #{tpu_custom_call.1} parent=1 // pred_region
      _
    $region25: #{tpu_custom_call.1} parent=1 // pred_fallthru
      _
    // Predicated region
    $region26: #{tpu_custom_call.1} parent=1 // pred_check
      _
    $region27: #{tpu_custom_call.1} parent=1 // pred_check_branch
      %47 = sbr.rel (0) target = $region29
    $region28: #{tpu_custom_call.1} parent=1 // pred_region
      %48 = dma.done [#allocation4], 4096
    $region29: #{tpu_custom_call.1} parent=1 // pred_fallthru
      _
    // Predicated region
    $region30: #{tpu_custom_call.1} parent=1 // pred_check
      _
    $region31: #{tpu_custom_call.1} parent=1 // pred_check_branch
      %50 = sbr.rel (0) target = $region33
    $region32: #{tpu_custom_call.1} parent=1 // pred_region
      %51 = dma.done [#allocation7], 1024
    $region33: #{tpu_custom_call.1} parent=1 // pred_fallthru
      _
    %v53 = vld [vmem:[%s0] sm:$0xf]
    %v54 = vld [vmem:[%s0 + $0x4] sm:$0xf]
    %v55 = vld [vmem:[%s0 + $0x8] sm:$0xf]
    %v56 = vld [vmem:[%s0 + $0xc] sm:$0xf]
    %v57 = vld [vmem:[%s0 + $0x10] sm:$0xf]
    %v58 = vld [vmem:[%s0 + $0x14] sm:$0xf]
    %v59 = vld [vmem:[%s0 + $0x18] sm:$0xf]
    %v60 = vld [vmem:[%s0 + $0x1c] sm:$0xf]
    %v61 = vld [vmem:[%s1] sm:$0xff]
    %v62 = vld [vmem:[%s1 + $0x8] sm:$0xff]
    %v63 = vld [vmem:[%s1 + $0x10] sm:$0x11]
    %v64 = vld [vmem:[%s1 + $0x18] sm:$0x11]
    %v65 = vld [vmem:[%s3] sm:$0xf]
    %v67 = vlaneseq
    %v68 = vshrl.u32 %v67, 7
    %v69 = vsub.s32 0, %v68
    %v70 = vrot.slane %v65, %v69
    %v71 = vlaneseq
    %v72 = vshrl.u32 %v71, 7
    %v73 = vsub.s32 1, %v72
    %v74 = vrot.slane %v65, %v73
    %v75 = vlaneseq
    %v76 = vshrl.u32 %v75, 7
    %v77 = vsub.s32 2, %v76
    %v78 = vrot.slane %v65, %v77
    %v79 = vlaneseq
    %v80 = vshrl.u32 %v79, 7
    %v81 = vsub.s32 3, %v80
    %v82 = vrot.slane %v65, %v81
    %v95 = vunpack.c.l.b16 %v53
    %v96 = vunpack.c.l.b16 %v54
    %v97 = vunpack.c.l.b16 %v55
    %v98 = vunpack.c.l.b16 %v56
    %v99 = vunpack.c.l.b16 %v57
    %v100 = vunpack.c.l.b16 %v58
    %v101 = vunpack.c.l.b16 %v59
    %v102 = vunpack.c.l.b16 %v60
    %v103 = vpack.c.b16 %v96, %v95
    %v104 = vpack.c.b16 %v98, %v97
    %v105 = vpack.c.b16 %v100, %v99
    %v106 = vpack.c.b16 %v102, %v101
    %v111 = vunpack.c.l.b16 %v61
    %v112 = vunpack.c.h.b16 %v61
    %v113 = vunpack.c.l.b16 %v62
    %v114 = vunpack.c.h.b16 %v62
    %v115 = vunpack.c.l.b16 %v63
    %v116 = vunpack.c.h.b16 %v63
    %v117 = vunpack.c.l.b16 %v64
    %v118 = vunpack.c.h.b16 %v64
    %v119 = vpack.c.b16 %v115, %v111
    %v120 = vpack.c.b16 %v116, %v112
    %v121 = vpack.c.b16 %v117, %v113
    %v122 = vpack.c.b16 %v118, %v114
    %vm123 = vcmask 80896
    %v125 = vsel %vm123, %v103, 0
    %v128 = vsel %vm123, %v104, 0
    %v131 = vsel %vm123, %v105, 0
    %v134 = vsel %vm123, %v106, 0
    %vm136 = vcmask 1044480
    %v138 = vsel %vm136, %v119, 0
    %v141 = vsel %vm136, %v120, 0
    %v144 = vsel %vm136, %v121, 0
    %v147 = vsel %vm136, %v122, 0
    %149 = vmatprep.subr.bf16.mxu0 0
    %150 = vmatpush1.bf16.msra.mxu0 0
    %151 = vmatprep.subr.bf16.mxu0 0
    %152 = vmatpush1.bf16.msra.mxu0 0
    %153 = vmatprep.subr.bf16.mxu0 0
    %154 = vmatpush1.bf16.msra.mxu0 0
    %155 = vmatprep.subr.bf16.mxu0 0
    %156 = vmatpush1.bf16.msra.mxu0 0
    %157 = vmatprep.subr.bf16.mxu0 0
    %158 = vmatpush1.bf16.msra.mxu0 0
    %159 = vmatprep.subr.bf16.mxu0 0
    %160 = vmatpush1.bf16.msra.mxu0 0
    %161 = vmatprep.subr.bf16.mxu0 0
    %162 = vmatpush1.bf16.msra.mxu0 0
    %163 = vmatprep.subr.bf16.mxu0 %v141
    %164 = vmatpush1.bf16.msra.mxu0 %v138
    %165 = vmatprep.subr.bf16.mxu0 0
    %166 = vmatpush2.bf16.msra.mxu0 0
    %167 = vmatprep.subr.bf16.mxu0 0
    %168 = vmatpush2.bf16.msra.mxu0 0
    %169 = vmatprep.subr.bf16.mxu0 0
    %170 = vmatpush2.bf16.msra.mxu0 0
    %171 = vmatprep.subr.bf16.mxu0 0
    %172 = vmatpush2.bf16.msra.mxu0 0
    %173 = vmatprep.subr.bf16.mxu0 0
    %174 = vmatpush2.bf16.msra.mxu0 0
    %175 = vmatprep.subr.bf16.mxu0 0
    %176 = vmatpush2.bf16.msra.mxu0 0
    %177 = vmatprep.subr.bf16.mxu0 0
    %178 = vmatpush2.bf16.msra.mxu0 0
    %179 = vmatprep.subr.bf16.mxu0 0
    %180 = vmatpush2.bf16.msra.mxu0 0
    %181 = vmatprep.mubr.bf16.mxu0 0
    %182 = vmatmul.mubr.bf16.gmra.mxu0 %v125
    %v183 = vpop.f32.mrf.mxu0
    %v184 = vadd.f32 %v70, %v183
    %v185 = vpop.f32.mrf.mxu0
    %v186 = vadd.f32 %v74, %v185
    %v187 = vpop.f32.mrf.mxu0
    %v188 = vadd.f32 %v70, %v187
    %v189 = vpop.f32.mrf.mxu0
    %v190 = vadd.f32 %v74, %v189
    %191 = vmatprep.mubr.bf16.mxu0 0
    %192 = vmatmul.mubr.bf16.gmra.mxu0 %v128
    %v193 = vpop.f32.mrf.mxu0
    %v194 = vadd.f32 %v70, %v193
    %v195 = vpop.f32.mrf.mxu0
    %v196 = vadd.f32 %v74, %v195
    %v197 = vpop.f32.mrf.mxu0
    %v198 = vadd.f32 %v70, %v197
    %v199 = vpop.f32.mrf.mxu0
    %v200 = vadd.f32 %v74, %v199
    %201 = vmatprep.mubr.bf16.mxu0 0
    %202 = vmatmul.mubr.bf16.gmra.mxu0 %v131
    %v203 = vpop.f32.mrf.mxu0
    %v204 = vadd.f32 %v70, %v203
    %v205 = vpop.f32.mrf.mxu0
    %v206 = vadd.f32 %v74, %v205
    %v207 = vpop.f32.mrf.mxu0
    %v208 = vadd.f32 %v70, %v207
    %v209 = vpop.f32.mrf.mxu0
    %v210 = vadd.f32 %v74, %v209
    %211 = vmatprep.mubr.bf16.mxu0 0
    %212 = vmatmul.mubr.bf16.gmra.mxu0 %v134
    %v213 = vpop.f32.mrf.mxu0
    %v214 = vadd.f32 %v70, %v213
    %v215 = vpop.f32.mrf.mxu0
    %v216 = vadd.f32 %v74, %v215
    %v217 = vpop.f32.mrf.mxu0
    %v218 = vadd.f32 %v70, %v217
    %v219 = vpop.f32.mrf.mxu0
    %v220 = vadd.f32 %v74, %v219
    %221 = vdwg.mxu0
    %222 = vmatprep.subr.bf16.mxu0 0
    %223 = vmatpush1.bf16.msra.mxu0 0
    %224 = vmatprep.subr.bf16.mxu0 0
    %225 = vmatpush1.bf16.msra.mxu0 0
    %226 = vmatprep.subr.bf16.mxu0 0
    %227 = vmatpush1.bf16.msra.mxu0 0
    %228 = vmatprep.subr.bf16.mxu0 0
    %229 = vmatpush1.bf16.msra.mxu0 0
    %230 = vmatprep.subr.bf16.mxu0 0
    %231 = vmatpush1.bf16.msra.mxu0 0
    %232 = vmatprep.subr.bf16.mxu0 0
    %233 = vmatpush1.bf16.msra.mxu0 0
    %234 = vmatprep.subr.bf16.mxu0 0
    %235 = vmatpush1.bf16.msra.mxu0 0
    %236 = vmatprep.subr.bf16.mxu0 %v147
    %237 = vmatpush1.bf16.msra.mxu0 %v144
    %238 = vmatprep.subr.bf16.mxu0 0
    %239 = vmatpush2.bf16.msra.mxu0 0
    %240 = vmatprep.subr.bf16.mxu0 0
    %241 = vmatpush2.bf16.msra.mxu0 0
    %242 = vmatprep.subr.bf16.mxu0 0
    %243 = vmatpush2.bf16.msra.mxu0 0
    %244 = vmatprep.subr.bf16.mxu0 0
    %245 = vmatpush2.bf16.msra.mxu0 0
    %246 = vmatprep.subr.bf16.mxu0 0
    %247 = vmatpush2.bf16.msra.mxu0 0
    %248 = vmatprep.subr.bf16.mxu0 0
    %249 = vmatpush2.bf16.msra.mxu0 0
    %250 = vmatprep.subr.bf16.mxu0 0
    %251 = vmatpush2.bf16.msra.mxu0 0
    %252 = vmatprep.subr.bf16.mxu0 0
    %253 = vmatpush2.bf16.msra.mxu0 0
    %254 = vmatprep.mubr.bf16.mxu0 0
    %255 = vmatmul.mubr.bf16.gmra.mxu0 %v125
    %v256 = vpop.f32.mrf.mxu0
    %v257 = vadd.f32 %v78, %v256
    %v258 = vpop.f32.mrf.mxu0
    %v259 = vadd.f32 %v82, %v258
    %v260 = vpop.f32.mrf.mxu0
    %v261 = vadd.f32 %v78, %v260
    %v262 = vpop.f32.mrf.mxu0
    %v263 = vadd.f32 %v82, %v262
    %264 = vmatprep.mubr.bf16.mxu0 0
    %265 = vmatmul.mubr.bf16.gmra.mxu0 %v128
    %v266 = vpop.f32.mrf.mxu0
    %v267 = vadd.f32 %v78, %v266
    %v268 = vpop.f32.mrf.mxu0
    %v269 = vadd.f32 %v82, %v268
    %v270 = vpop.f32.mrf.mxu0
    %v271 = vadd.f32 %v78, %v270
    %v272 = vpop.f32.mrf.mxu0
    %v273 = vadd.f32 %v82, %v272
    %274 = vmatprep.mubr.bf16.mxu0 0
    %275 = vmatmul.mubr.bf16.gmra.mxu0 %v131
    %v276 = vpop.f32.mrf.mxu0
    %v277 = vadd.f32 %v78, %v276
    %v278 = vpop.f32.mrf.mxu0
    %v279 = vadd.f32 %v82, %v278
    %v280 = vpop.f32.mrf.mxu0
    %v281 = vadd.f32 %v78, %v280
    %v282 = vpop.f32.mrf.mxu0
    %v283 = vadd.f32 %v82, %v282
    %284 = vmatprep.mubr.bf16.mxu0 0
    %285 = vmatmul.mubr.bf16.gmra.mxu0 %v134
    %v286 = vpop.f32.mrf.mxu0
    %v287 = vadd.f32 %v78, %v286
    %v288 = vpop.f32.mrf.mxu0
    %v289 = vadd.f32 %v82, %v288
    %v290 = vpop.f32.mrf.mxu0
    %v291 = vadd.f32 %v78, %v290
    %v292 = vpop.f32.mrf.mxu0
    %v293 = vadd.f32 %v82, %v292
    %294 = vdwg.mxu0
    %295 = vst [vmem:[#allocation2] sm:$0xff] %v184
    %296 = vst [vmem:[#allocation2 + $0x8] sm:$0xff] %v186
    %297 = vst [vmem:[#allocation2 + $0x10] sm:$0xff] %v257
    %298 = vst [vmem:[#allocation2 + $0x18] sm:$0xff] %v259
    %299 = vst [vmem:[#allocation2 + $0x20] sm:$0xff] %v188
    %300 = vst [vmem:[#allocation2 + $0x28] sm:$0xff] %v190
    %301 = vst [vmem:[#allocation2 + $0x30] sm:$0xff] %v261
    %302 = vst [vmem:[#allocation2 + $0x38] sm:$0xff] %v263
    %303 = vst [vmem:[#allocation2 + $0x40] sm:$0xff] %v194
    %304 = vst [vmem:[#allocation2 + $0x48] sm:$0xff] %v196
    %305 = vst [vmem:[#allocation2 + $0x50] sm:$0xff] %v267
    %306 = vst [vmem:[#allocation2 + $0x58] sm:$0xff] %v269
    %307 = vst [vmem:[#allocation2 + $0x60] sm:$0xff] %v198
    %308 = vst [vmem:[#allocation2 + $0x68] sm:$0xff] %v200
    %309 = vst [vmem:[#allocation2 + $0x70] sm:$0xff] %v271
    %310 = vst [vmem:[#allocation2 + $0x78] sm:$0xff] %v273
    %311 = vst [vmem:[#allocation2 + $0x80] sm:$0xff] %v204
    %312 = vst [vmem:[#allocation2 + $0x88] sm:$0xff] %v206
    %313 = vst [vmem:[#allocation2 + $0x90] sm:$0xff] %v277
    %314 = vst [vmem:[#allocation2 + $0x98] sm:$0xff] %v279
    %315 = vst [vmem:[#allocation2 + $0xa0] sm:$0xff] %v208
    %316 = vst [vmem:[#allocation2 + $0xa8] sm:$0xff] %v210
    %317 = vst [vmem:[#allocation2 + $0xb0] sm:$0xff] %v281
    %318 = vst [vmem:[#allocation2 + $0xb8] sm:$0xff] %v283
    %319 = vst [vmem:[#allocation2 + $0xc0] sm:$0xff] %v214
    %320 = vst [vmem:[#allocation2 + $0xc8] sm:$0xff] %v216
    %321 = vst [vmem:[#allocation2 + $0xd0] sm:$0xff] %v287
    %322 = vst [vmem:[#allocation2 + $0xd8] sm:$0xff] %v289
    %323 = vst [vmem:[#allocation2 + $0xe0] sm:$0xff] %v218
    %324 = vst [vmem:[#allocation2 + $0xe8] sm:$0xff] %v220
    %325 = vst [vmem:[#allocation2 + $0xf0] sm:$0xff] %v291
    %326 = vst [vmem:[#allocation2 + $0xf8] sm:$0xff] %v293
    %v327 = vld [vmem:[#allocation2] sm:$0xff]
    %v328 = vld [vmem:[#allocation2 + $0x8] sm:$0xff]
    %v329 = vld [vmem:[#allocation2 + $0x10] sm:$0xff]
    %v330 = vld [vmem:[#allocation2 + $0x18] sm:$0xff]
    %v331 = vld [vmem:[#allocation3] sm:$0xff]
    %v332 = vld [vmem:[#allocation3 + $0x8] sm:$0xff]
    %v333 = vld [vmem:[#allocation3 + $0x10] sm:$0xff]
    %v334 = vld [vmem:[#allocation3 + $0x18] sm:$0xff]
    %v335 = vld [vmem:[#allocation3 + $0x20] sm:$0xff]
    %v336 = vld [vmem:[#allocation3 + $0x28] sm:$0xff]
    %v337 = vld [vmem:[#allocation3 + $0x30] sm:$0xff]
    %v338 = vld [vmem:[#allocation3 + $0x38] sm:$0xff]
    %v339 = vld [vmem:[#allocation3 + $0x40] sm:$0xff]
    %v340 = vld [vmem:[#allocation3 + $0x48] sm:$0xff]
    %v341 = vld [vmem:[#allocation3 + $0x50] sm:$0xff]
    %v342 = vld [vmem:[#allocation3 + $0x58] sm:$0xff]
    %v343 = vld [vmem:[#allocation3 + $0x60] sm:$0xff]
    %v344 = vld [vmem:[#allocation3 + $0x68] sm:$0xff]
    %v345 = vld [vmem:[#allocation3 + $0x70] sm:$0xff]
    %v346 = vld [vmem:[#allocation3 + $0x78] sm:$0xff]
    %v347 = vld [vmem:[#allocation3 + $0x80] sm:$0xff]
    %v348 = vld [vmem:[#allocation3 + $0x88] sm:$0xff]
    %v349 = vld [vmem:[#allocation3 + $0x90] sm:$0xff]
    %v350 = vld [vmem:[#allocation3 + $0x98] sm:$0xff]
    %v351 = vld [vmem:[#allocation3 + $0xa0] sm:$0xff]
    %v352 = vld [vmem:[#allocation3 + $0xa8] sm:$0xff]
    %v353 = vld [vmem:[#allocation3 + $0xb0] sm:$0xff]
    %v354 = vld [vmem:[#allocation3 + $0xb8] sm:$0xff]
    %v355 = vld [vmem:[#allocation3 + $0xc0] sm:$0xff]
    %v356 = vld [vmem:[#allocation3 + $0xc8] sm:$0xff]
    %v357 = vld [vmem:[#allocation3 + $0xd0] sm:$0xff]
    %v358 = vld [vmem:[#allocation3 + $0xd8] sm:$0xff]
    %v359 = vld [vmem:[#allocation3 + $0xe0] sm:$0xff]
    %v360 = vld [vmem:[#allocation3 + $0xe8] sm:$0xff]
    %v361 = vld [vmem:[#allocation3 + $0xf0] sm:$0xff]
    %v362 = vld [vmem:[#allocation3 + $0xf8] sm:$0xff]
    %v395 = vunpack.c.l.b16 %v331
    %v396 = vunpack.c.h.b16 %v331
    %v397 = vunpack.c.l.b16 %v332
    %v398 = vunpack.c.h.b16 %v332
    %v399 = vunpack.c.l.b16 %v333
    %v400 = vunpack.c.h.b16 %v333
    %v401 = vunpack.c.l.b16 %v334
    %v402 = vunpack.c.h.b16 %v334
    %v403 = vunpack.c.l.b16 %v335
    %v404 = vunpack.c.h.b16 %v335
    %v405 = vunpack.c.l.b16 %v336
    %v406 = vunpack.c.h.b16 %v336
    %v407 = vunpack.c.l.b16 %v337
    %v408 = vunpack.c.h.b16 %v337
    %v409 = vunpack.c.l.b16 %v338
    %v410 = vunpack.c.h.b16 %v338
    %v411 = vunpack.c.l.b16 %v339
    %v412 = vunpack.c.h.b16 %v339
    %v413 = vunpack.c.l.b16 %v340
    %v414 = vunpack.c.h.b16 %v340
    %v415 = vunpack.c.l.b16 %v341
    %v416 = vunpack.c.h.b16 %v341
    %v417 = vunpack.c.l.b16 %v342
    %v418 = vunpack.c.h.b16 %v342
    %v419 = vunpack.c.l.b16 %v343
    %v420 = vunpack.c.h.b16 %v343
    %v421 = vunpack.c.l.b16 %v344
    %v422 = vunpack.c.h.b16 %v344
    %v423 = vunpack.c.l.b16 %v345
    %v424 = vunpack.c.h.b16 %v345
    %v425 = vunpack.c.l.b16 %v346
    %v426 = vunpack.c.h.b16 %v346
    %v427 = vunpack.c.l.b16 %v347
    %v428 = vunpack.c.h.b16 %v347
    %v429 = vunpack.c.l.b16 %v348
    %v430 = vunpack.c.h.b16 %v348
    %v431 = vunpack.c.l.b16 %v349
    %v432 = vunpack.c.h.b16 %v349
    %v433 = vunpack.c.l.b16 %v350
    %v434 = vunpack.c.h.b16 %v350
    %v435 = vunpack.c.l.b16 %v351
    %v436 = vunpack.c.h.b16 %v351
    %v437 = vunpack.c.l.b16 %v352
    %v438 = vunpack.c.h.b16 %v352
    %v439 = vunpack.c.l.b16 %v353
    %v440 = vunpack.c.h.b16 %v353
    %v441 = vunpack.c.l.b16 %v354
    %v442 = vunpack.c.h.b16 %v354
    %v443 = vunpack.c.l.b16 %v355
    %v444 = vunpack.c.h.b16 %v355
    %v445 = vunpack.c.l.b16 %v356
    %v446 = vunpack.c.h.b16 %v356
    %v447 = vunpack.c.l.b16 %v357
    %v448 = vunpack.c.h.b16 %v357
    %v449 = vunpack.c.l.b16 %v358
    %v450 = vunpack.c.h.b16 %v358
    %v451 = vunpack.c.l.b16 %v359
    %v452 = vunpack.c.h.b16 %v359
    %v453 = vunpack.c.l.b16 %v360
    %v454 = vunpack.c.h.b16 %v360
    %v455 = vunpack.c.l.b16 %v361
    %v456 = vunpack.c.h.b16 %v361
    %v457 = vunpack.c.l.b16 %v362
    %v458 = vunpack.c.h.b16 %v362
    %v459 = vpack.c.b16 %v399, %v395
    %v460 = vpack.c.b16 %v400, %v396
    %v461 = vpack.c.b16 %v401, %v397
    %v462 = vpack.c.b16 %v402, %v398
    %v463 = vpack.c.b16 %v407, %v403
    %v464 = vpack.c.b16 %v408, %v404
    %v465 = vpack.c.b16 %v409, %v405
    %v466 = vpack.c.b16 %v410, %v406
    %v467 = vpack.c.b16 %v415, %v411
    %v468 = vpack.c.b16 %v416, %v412
    %v469 = vpack.c.b16 %v417, %v413
    %v470 = vpack.c.b16 %v418, %v414
    %v471 = vpack.c.b16 %v423, %v419
    %v472 = vpack.c.b16 %v424, %v420
    %v473 = vpack.c.b16 %v425, %v421
    %v474 = vpack.c.b16 %v426, %v422
    %v475 = vpack.c.b16 %v431, %v427
    %v476 = vpack.c.b16 %v432, %v428
    %v477 = vpack.c.b16 %v433, %v429
    %v478 = vpack.c.b16 %v434, %v430
    %v479 = vpack.c.b16 %v439, %v435
    %v480 = vpack.c.b16 %v440, %v436
    %v481 = vpack.c.b16 %v441, %v437
    %v482 = vpack.c.b16 %v442, %v438
    %v483 = vpack.c.b16 %v447, %v443
    %v484 = vpack.c.b16 %v448, %v444
    %v485 = vpack.c.b16 %v449, %v445
    %v486 = vpack.c.b16 %v450, %v446
    %v487 = vpack.c.b16 %v455, %v451
    %v488 = vpack.c.b16 %v456, %v452
    %v489 = vpack.c.b16 %v457, %v453
    %v490 = vpack.c.b16 %v458, %v454
    %523 = vmatprep.subr.bf16.mxu0 %v488
    %524 = vmatpush1.bf16.msra.mxu0 %v487
    %525 = vmatprep.subr.bf16.mxu0 %v484
    %526 = vmatpush1.bf16.msra.mxu0 %v483
    %527 = vmatprep.subr.bf16.mxu0 %v480
    %528 = vmatpush1.bf16.msra.mxu0 %v479
    %529 = vmatprep.subr.bf16.mxu0 %v476
    %530 = vmatpush1.bf16.msra.mxu0 %v475
    %531 = vmatprep.subr.bf16.mxu0 %v472
    %532 = vmatpush1.bf16.msra.mxu0 %v471
    %533 = vmatprep.subr.bf16.mxu0 %v468
    %534 = vmatpush1.bf16.msra.mxu0 %v467
    %535 = vmatprep.subr.bf16.mxu0 %v464
    %536 = vmatpush1.bf16.msra.mxu0 %v463
    %537 = vmatprep.subr.bf16.mxu0 %v460
    %538 = vmatpush1.bf16.msra.mxu0 %v459
    %539 = vmatprep.subr.bf16.mxu0 0
    %540 = vmatpush2.bf16.msra.mxu0 0
    %541 = vmatprep.subr.bf16.mxu0 0
    %542 = vmatpush2.bf16.msra.mxu0 0
    %543 = vmatprep.subr.bf16.mxu0 0
    %544 = vmatpush2.bf16.msra.mxu0 0
    %545 = vmatprep.subr.bf16.mxu0 0
    %546 = vmatpush2.bf16.msra.mxu0 0
    %547 = vmatprep.subr.bf16.mxu0 0
    %548 = vmatpush2.bf16.msra.mxu0 0
    %549 = vmatprep.subr.bf16.mxu0 0
    %550 = vmatpush2.bf16.msra.mxu0 0
    %551 = vmatprep.subr.bf16.mxu0 0
    %552 = vmatpush2.bf16.msra.mxu0 0
    %553 = vmatprep.subr.bf16.mxu0 0
    %554 = vmatpush2.bf16.msra.mxu0 0
    %555 = vmatprep.mubr.bf16.mxu0 0
    %556 = vmatmul.mubr.bf16.gmra.mxu0 0
    %v557 = vpop.f32.mrf.mxu0
    %v558 = vadd.f32 0.0, %v557
    %v559 = vpop.f32.mrf.mxu0
    %v560 = vadd.f32 0.0, %v559
    %v561 = vpop.f32.mrf.mxu0
    %v562 = vpop.f32.mrf.mxu0
    %563 = vdwg.mxu0
    %564 = vmatprep.subr.bf16.mxu0 %v490
    %565 = vmatpush1.bf16.msra.mxu0 %v489
    %566 = vmatprep.subr.bf16.mxu0 %v486
    %567 = vmatpush1.bf16.msra.mxu0 %v485
    %568 = vmatprep.subr.bf16.mxu0 %v482
    %569 = vmatpush1.bf16.msra.mxu0 %v481
    %570 = vmatprep.subr.bf16.mxu0 %v478
    %571 = vmatpush1.bf16.msra.mxu0 %v477
    %572 = vmatprep.subr.bf16.mxu0 %v474
    %573 = vmatpush1.bf16.msra.mxu0 %v473
    %574 = vmatprep.subr.bf16.mxu0 %v470
    %575 = vmatpush1.bf16.msra.mxu0 %v469
    %576 = vmatprep.subr.bf16.mxu0 %v466
    %577 = vmatpush1.bf16.msra.mxu0 %v465
    %578 = vmatprep.subr.bf16.mxu0 %v462
    %579 = vmatpush1.bf16.msra.mxu0 %v461
    %580 = vmatprep.subr.bf16.mxu0 0
    %581 = vmatpush2.bf16.msra.mxu0 0
    %582 = vmatprep.subr.bf16.mxu0 0
    %583 = vmatpush2.bf16.msra.mxu0 0
    %584 = vmatprep.subr.bf16.mxu0 0
    %585 = vmatpush2.bf16.msra.mxu0 0
    %586 = vmatprep.subr.bf16.mxu0 0
    %587 = vmatpush2.bf16.msra.mxu0 0
    %588 = vmatprep.subr.bf16.mxu0 0
    %589 = vmatpush2.bf16.msra.mxu0 0
    %590 = vmatprep.subr.bf16.mxu0 0
    %591 = vmatpush2.bf16.msra.mxu0 0
    %592 = vmatprep.subr.bf16.mxu0 0
    %593 = vmatpush2.bf16.msra.mxu0 0
    %594 = vmatprep.subr.bf16.mxu0 0
    %595 = vmatpush2.bf16.msra.mxu0 0
    %596 = vmatprep.mubr.bf16.mxu0 0
    %597 = vmatmul.mubr.bf16.gmra.mxu0 0
    %v598 = vpop.f32.mrf.mxu0
    %v599 = vadd.f32 0.0, %v598
    %v600 = vpop.f32.mrf.mxu0
    %v601 = vadd.f32 0.0, %v600
    %v602 = vpop.f32.mrf.mxu0
    %v603 = vpop.f32.mrf.mxu0
    %604 = vdwg.mxu0
    %v605 = vadd.f32 %v327, %v558
    %v606 = vadd.f32 %v328, %v560
    %v607 = vadd.f32 %v329, %v599
    %v608 = vadd.f32 %v330, %v601
    %v609 = vmul.f32 %v605, 0.5
    %v610 = vtanh.pop %v609
    %v611 = vmul.f32 %v610, 0.5
    %v612 = vadd.f32 %v611, 0.5
    %v613 = vmul.f32 %v606, 0.5
    %v614 = vtanh.pop %v613
    %v615 = vmul.f32 %v614, 0.5
    %v616 = vadd.f32 %v615, 0.5
    %v617 = vtanh.pop %v607
    %v618 = vmul.f32 %v608, 0.5
    %v619 = vtanh.pop %v618
    %v620 = vmul.f32 %v619, 0.5
    %v621 = vadd.f32 %v620, 0.5
    %v622 = vmul.f32 %v616, 0.0
    %v623 = vmul.f32 %v612, %v617
    %v624 = vadd.f32 %v622, %v623
    %v625 = vtanh.pop %v624
    %v626 = vmul.f32 %v621, %v625
    %v627 = vld [vmem:[#allocation2 + $0x20] sm:$0xff]
    %v628 = vld [vmem:[#allocation2 + $0x28] sm:$0xff]
    %v629 = vld [vmem:[#allocation2 + $0x30] sm:$0xff]
    %v630 = vld [vmem:[#allocation2 + $0x38] sm:$0xff]
    %v631 = vpack.c.bf16 %v626, %v626
    %632 = vmatprep.subr.bf16.mxu0 %v488
    %633 = vmatpush1.bf16.msra.mxu0 %v487
    %634 = vmatprep.subr.bf16.mxu0 %v484
    %635 = vmatpush1.bf16.msra.mxu0 %v483
    %636 = vmatprep.subr.bf16.mxu0 %v480
    %637 = vmatpush1.bf16.msra.mxu0 %v479
    %638 = vmatprep.subr.bf16.mxu0 %v476
    %639 = vmatpush1.bf16.msra.mxu0 %v475
    %640 = vmatprep.subr.bf16.mxu0 %v472
    %641 = vmatpush1.bf16.msra.mxu0 %v471
    %642 = vmatprep.subr.bf16.mxu0 %v468
    %643 = vmatpush1.bf16.msra.mxu0 %v467
    %644 = vmatprep.subr.bf16.mxu0 %v464
    %645 = vmatpush1.bf16.msra.mxu0 %v463
    %646 = vmatprep.subr.bf16.mxu0 %v460
    %647 = vmatpush1.bf16.msra.mxu0 %v459
    %648 = vmatprep.subr.bf16.mxu0 0
    %649 = vmatpush2.bf16.msra.mxu0 0
    %650 = vmatprep.subr.bf16.mxu0 0
    %651 = vmatpush2.bf16.msra.mxu0 0
    %652 = vmatprep.subr.bf16.mxu0 0
    %653 = vmatpush2.bf16.msra.mxu0 0
    %654 = vmatprep.subr.bf16.mxu0 0
    %655 = vmatpush2.bf16.msra.mxu0 0
    %656 = vmatprep.subr.bf16.mxu0 0
    %657 = vmatpush2.bf16.msra.mxu0 0
    %658 = vmatprep.subr.bf16.mxu0 0
    %659 = vmatpush2.bf16.msra.mxu0 0
    %660 = vmatprep.subr.bf16.mxu0 0
    %661 = vmatpush2.bf16.msra.mxu0 0
    %662 = vmatprep.subr.bf16.mxu0 0
    %663 = vmatpush2.bf16.msra.mxu0 0
    %664 = vmatprep.mubr.bf16.mxu0 0
    %665 = vmatmul.mubr.bf16.gmra.mxu0 %v631
    %v666 = vpop.f32.mrf.mxu0
    %v667 = vadd.f32 0.0, %v666
    %v668 = vpop.f32.mrf.mxu0
    %v669 = vadd.f32 0.0, %v668
    %v670 = vpop.f32.mrf.mxu0
    %v671 = vpop.f32.mrf.mxu0
    %672 = vdwg.mxu0
    %673 = vmatprep.subr.bf16.mxu0 %v490
    %674 = vmatpush1.bf16.msra.mxu0 %v489
    %675 = vmatprep.subr.bf16.mxu0 %v486
    %676 = vmatpush1.bf16.msra.mxu0 %v485
    %677 = vmatprep.subr.bf16.mxu0 %v482
    %678 = vmatpush1.bf16.msra.mxu0 %v481
    %679 = vmatprep.subr.bf16.mxu0 %v478
    %680 = vmatpush1.bf16.msra.mxu0 %v477
    %681 = vmatprep.subr.bf16.mxu0 %v474
    %682 = vmatpush1.bf16.msra.mxu0 %v473
    %683 = vmatprep.subr.bf16.mxu0 %v470
    %684 = vmatpush1.bf16.msra.mxu0 %v469
    %685 = vmatprep.subr.bf16.mxu0 %v466
    %686 = vmatpush1.bf16.msra.mxu0 %v465
    %687 = vmatprep.subr.bf16.mxu0 %v462
    %688 = vmatpush1.bf16.msra.mxu0 %v461
    %689 = vmatprep.subr.bf16.mxu0 0
    %690 = vmatpush2.bf16.msra.mxu0 0
    %691 = vmatprep.subr.bf16.mxu0 0
    %692 = vmatpush2.bf16.msra.mxu0 0
    %693 = vmatprep.subr.bf16.mxu0 0
    %694 = vmatpush2.bf16.msra.mxu0 0
    %695 = vmatprep.subr.bf16.mxu0 0
    %696 = vmatpush2.bf16.msra.mxu0 0
    %697 = vmatprep.subr.bf16.mxu0 0
    %698 = vmatpush2.bf16.msra.mxu0 0
    %699 = vmatprep.subr.bf16.mxu0 0
    %700 = vmatpush2.bf16.msra.mxu0 0
    %701 = vmatprep.subr.bf16.mxu0 0
    %702 = vmatpush2.bf16.msra.mxu0 0
    %703 = vmatprep.subr.bf16.mxu0 0
    %704 = vmatpush2.bf16.msra.mxu0 0
    %705 = vmatprep.mubr.bf16.mxu0 0
    %706 = vmatmul.mubr.bf16.gmra.mxu0 %v631
    %v707 = vpop.f32.mrf.mxu0
    %v708 = vadd.f32 0.0, %v707
    %v709 = vpop.f32.mrf.mxu0
    %v710 = vadd.f32 0.0, %v709
    %v711 = vpop.f32.mrf.mxu0
    %v712 = vpop.f32.mrf.mxu0
    %713 = vdwg.mxu0
    %v714 = vadd.f32 %v627, %v667
    %v715 = vadd.f32 %v628, %v669
    %v716 = vadd.f32 %v629, %v708
    %v717 = vadd.f32 %v630, %v710
    %v718 = vmul.f32 %v714, 0.5
    %v719 = vtanh.pop %v718
    %v720 = vmul.f32 %v719, 0.5
    %v721 = vadd.f32 %v720, 0.5
    %v722 = vmul.f32 %v715, 0.5
    %v723 = vtanh.pop %v722
    %v724 = vmul.f32 %v723, 0.5
    %v725 = vadd.f32 %v724, 0.5
    %v726 = vtanh.pop %v716
    %v727 = vmul.f32 %v717, 0.5
    %v728 = vtanh.pop %v727
    %v729 = vmul.f32 %v728, 0.5
    %v730 = vadd.f32 %v729, 0.5
    %v731 = vmul.f32 %v725, %v624
    %v732 = vmul.f32 %v721, %v726
    %v733 = vadd.f32 %v731, %v732
    %v734 = vtanh.pop %v733
    %v735 = vmul.f32 %v730, %v734
    %v736 = vld [vmem:[#allocation2 + $0x40] sm:$0xff]
    %v737 = vld [vmem:[#allocation2 + $0x48] sm:$0xff]
    %v738 = vld [vmem:[#allocation2 + $0x50] sm:$0xff]
    %v739 = vld [vmem:[#allocation2 + $0x58] sm:$0xff]
    %v740 = vpack.c.bf16 %v735, %v735
    %741 = vmatprep.subr.bf16.mxu0 %v488
    %742 = vmatpush1.bf16.msra.mxu0 %v487
    %743 = vmatprep.subr.bf16.mxu0 %v484
    %744 = vmatpush1.bf16.msra.mxu0 %v483
    %745 = vmatprep.subr.bf16.mxu0 %v480
    %746 = vmatpush1.bf16.msra.mxu0 %v479
    %747 = vmatprep.subr.bf16.mxu0 %v476
    %748 = vmatpush1.bf16.msra.mxu0 %v475
    %749 = vmatprep.subr.bf16.mxu0 %v472
    %750 = vmatpush1.bf16.msra.mxu0 %v471
    %751 = vmatprep.subr.bf16.mxu0 %v468
    %752 = vmatpush1.bf16.msra.mxu0 %v467
    %753 = vmatprep.subr.bf16.mxu0 %v464
    %754 = vmatpush1.bf16.msra.mxu0 %v463
    %755 = vmatprep.subr.bf16.mxu0 %v460
    %756 = vmatpush1.bf16.msra.mxu0 %v459
    %757 = vmatprep.subr.bf16.mxu0 0
    %758 = vmatpush2.bf16.msra.mxu0 0
    %759 = vmatprep.subr.bf16.mxu0 0
    %760 = vmatpush2.bf16.msra.mxu0 0
    %761 = vmatprep.subr.bf16.mxu0 0
    %762 = vmatpush2.bf16.msra.mxu0 0
    %763 = vmatprep.subr.bf16.mxu0 0
    %764 = vmatpush2.bf16.msra.mxu0 0
    %765 = vmatprep.subr.bf16.mxu0 0
    %766 = vmatpush2.bf16.msra.mxu0 0
    %767 = vmatprep.subr.bf16.mxu0 0
    %768 = vmatpush2.bf16.msra.mxu0 0
    %769 = vmatprep.subr.bf16.mxu0 0
    %770 = vmatpush2.bf16.msra.mxu0 0
    %771 = vmatprep.subr.bf16.mxu0 0
    %772 = vmatpush2.bf16.msra.mxu0 0
    %773 = vmatprep.mubr.bf16.mxu0 0
    %774 = vmatmul.mubr.bf16.gmra.mxu0 %v740
    %v775 = vpop.f32.mrf.mxu0
    %v776 = vadd.f32 0.0, %v775
    %v777 = vpop.f32.mrf.mxu0
    %v778 = vadd.f32 0.0, %v777
    %v779 = vpop.f32.mrf.mxu0
    %v780 = vpop.f32.mrf.mxu0
    %781 = vdwg.mxu0
    %782 = vmatprep.subr.bf16.mxu0 %v490
    %783 = vmatpush1.bf16.msra.mxu0 %v489
    %784 = vmatprep.subr.bf16.mxu0 %v486
    %785 = vmatpush1.bf16.msra.mxu0 %v485
    %786 = vmatprep.subr.bf16.mxu0 %v482
    %787 = vmatpush1.bf16.msra.mxu0 %v481
    %788 = vmatprep.subr.bf16.mxu0 %v478
    %789 = vmatpush1.bf16.msra.mxu0 %v477
    %790 = vmatprep.subr.bf16.mxu0 %v474
    %791 = vmatpush1.bf16.msra.mxu0 %v473
    %792 = vmatprep.subr.bf16.mxu0 %v470
    %793 = vmatpush1.bf16.msra.mxu0 %v469
    %794 = vmatprep.subr.bf16.mxu0 %v466
    %795 = vmatpush1.bf16.msra.mxu0 %v465
    %796 = vmatprep.subr.bf16.mxu0 %v462
    %797 = vmatpush1.bf16.msra.mxu0 %v461
    %798 = vmatprep.subr.bf16.mxu0 0
    %799 = vmatpush2.bf16.msra.mxu0 0
    %800 = vmatprep.subr.bf16.mxu0 0
    %801 = vmatpush2.bf16.msra.mxu0 0
    %802 = vmatprep.subr.bf16.mxu0 0
    %803 = vmatpush2.bf16.msra.mxu0 0
    %804 = vmatprep.subr.bf16.mxu0 0
    %805 = vmatpush2.bf16.msra.mxu0 0
    %806 = vmatprep.subr.bf16.mxu0 0
    %807 = vmatpush2.bf16.msra.mxu0 0
    %808 = vmatprep.subr.bf16.mxu0 0
    %809 = vmatpush2.bf16.msra.mxu0 0
    %810 = vmatprep.subr.bf16.mxu0 0
    %811 = vmatpush2.bf16.msra.mxu0 0
    %812 = vmatprep.subr.bf16.mxu0 0
    %813 = vmatpush2.bf16.msra.mxu0 0
    %814 = vmatprep.mubr.bf16.mxu0 0
    %815 = vmatmul.mubr.bf16.gmra.mxu0 %v740
    %v816 = vpop.f32.mrf.mxu0
    %v817 = vadd.f32 0.0, %v816
    %v818 = vpop.f32.mrf.mxu0
    %v819 = vadd.f32 0.0, %v818
    %v820 = vpop.f32.mrf.mxu0
    %v821 = vpop.f32.mrf.mxu0
    %822 = vdwg.mxu0
    %v823 = vadd.f32 %v736, %v776
    %v824 = vadd.f32 %v737, %v778
    %v825 = vadd.f32 %v738, %v817
    %v826 = vadd.f32 %v739, %v819
    %v827 = vmul.f32 %v823, 0.5
    %v828 = vtanh.pop %v827
    %v829 = vmul.f32 %v828, 0.5
    %v830 = vadd.f32 %v829, 0.5
    %v831 = vmul.f32 %v824, 0.5
    %v832 = vtanh.pop %v831
    %v833 = vmul.f32 %v832, 0.5
    %v834 = vadd.f32 %v833, 0.5
    %v835 = vtanh.pop %v825
    %v836 = vmul.f32 %v826, 0.5
    %v837 = vtanh.pop %v836
    %v838 = vmul.f32 %v837, 0.5
    %v839 = vadd.f32 %v838, 0.5
    %v840 = vmul.f32 %v834, %v733
    %v841 = vmul.f32 %v830, %v835
    %v842 = vadd.f32 %v840, %v841
    %v843 = vtanh.pop %v842
    %v844 = vmul.f32 %v839, %v843
    %v845 = vld [vmem:[#allocation2 + $0x60] sm:$0xff]
    %v846 = vld [vmem:[#allocation2 + $0x68] sm:$0xff]
    %v847 = vld [vmem:[#allocation2 + $0x70] sm:$0xff]
    %v848 = vld [vmem:[#allocation2 + $0x78] sm:$0xff]
    %v849 = vpack.c.bf16 %v844, %v844
    %850 = vmatprep.subr.bf16.mxu0 %v488
    %851 = vmatpush1.bf16.msra.mxu0 %v487
    %852 = vmatprep.subr.bf16.mxu0 %v484
    %853 = vmatpush1.bf16.msra.mxu0 %v483
    %854 = vmatprep.subr.bf16.mxu0 %v480
    %855 = vmatpush1.bf16.msra.mxu0 %v479
    %856 = vmatprep.subr.bf16.mxu0 %v476
    %857 = vmatpush1.bf16.msra.mxu0 %v475
    %858 = vmatprep.subr.bf16.mxu0 %v472
    %859 = vmatpush1.bf16.msra.mxu0 %v471
    %860 = vmatprep.subr.bf16.mxu0 %v468
    %861 = vmatpush1.bf16.msra.mxu0 %v467
    %862 = vmatprep.subr.bf16.mxu0 %v464
    %863 = vmatpush1.bf16.msra.mxu0 %v463
    %864 = vmatprep.subr.bf16.mxu0 %v460
    %865 = vmatpush1.bf16.msra.mxu0 %v459
    %866 = vmatprep.subr.bf16.mxu0 0
    %867 = vmatpush2.bf16.msra.mxu0 0
    %868 = vmatprep.subr.bf16.mxu0 0
    %869 = vmatpush2.bf16.msra.mxu0 0
    %870 = vmatprep.subr.bf16.mxu0 0
    %871 = vmatpush2.bf16.msra.mxu0 0
    %872 = vmatprep.subr.bf16.mxu0 0
    %873 = vmatpush2.bf16.msra.mxu0 0
    %874 = vmatprep.subr.bf16.mxu0 0
    %875 = vmatpush2.bf16.msra.mxu0 0
    %876 = vmatprep.subr.bf16.mxu0 0
    %877 = vmatpush2.bf16.msra.mxu0 0
    %878 = vmatprep.subr.bf16.mxu0 0
    %879 = vmatpush2.bf16.msra.mxu0 0
    %880 = vmatprep.subr.bf16.mxu0 0
    %881 = vmatpush2.bf16.msra.mxu0 0
    %882 = vmatprep.mubr.bf16.mxu0 0
    %883 = vmatmul.mubr.bf16.gmra.mxu0 %v849
    %v884 = vpop.f32.mrf.mxu0
    %v885 = vadd.f32 0.0, %v884
    %v886 = vpop.f32.mrf.mxu0
    %v887 = vadd.f32 0.0, %v886
    %v888 = vpop.f32.mrf.mxu0
    %v889 = vpop.f32.mrf.mxu0
    %890 = vdwg.mxu0
    %891 = vmatprep.subr.bf16.mxu0 %v490
    %892 = vmatpush1.bf16.msra.mxu0 %v489
    %893 = vmatprep.subr.bf16.mxu0 %v486
    %894 = vmatpush1.bf16.msra.mxu0 %v485
    %895 = vmatprep.subr.bf16.mxu0 %v482
    %896 = vmatpush1.bf16.msra.mxu0 %v481
    %897 = vmatprep.subr.bf16.mxu0 %v478
    %898 = vmatpush1.bf16.msra.mxu0 %v477
    %899 = vmatprep.subr.bf16.mxu0 %v474
    %900 = vmatpush1.bf16.msra.mxu0 %v473
    %901 = vmatprep.subr.bf16.mxu0 %v470
    %902 = vmatpush1.bf16.msra.mxu0 %v469
    %903 = vmatprep.subr.bf16.mxu0 %v466
    %904 = vmatpush1.bf16.msra.mxu0 %v465
    %905 = vmatprep.subr.bf16.mxu0 %v462
    %906 = vmatpush1.bf16.msra.mxu0 %v461
    %907 = vmatprep.subr.bf16.mxu0 0
    %908 = vmatpush2.bf16.msra.mxu0 0
    %909 = vmatprep.subr.bf16.mxu0 0
    %910 = vmatpush2.bf16.msra.mxu0 0
    %911 = vmatprep.subr.bf16.mxu0 0
    %912 = vmatpush2.bf16.msra.mxu0 0
    %913 = vmatprep.subr.bf16.mxu0 0
    %914 = vmatpush2.bf16.msra.mxu0 0
    %915 = vmatprep.subr.bf16.mxu0 0
    %916 = vmatpush2.bf16.msra.mxu0 0
    %917 = vmatprep.subr.bf16.mxu0 0
    %918 = vmatpush2.bf16.msra.mxu0 0
    %919 = vmatprep.subr.bf16.mxu0 0
    %920 = vmatpush2.bf16.msra.mxu0 0
    %921 = vmatprep.subr.bf16.mxu0 0
    %922 = vmatpush2.bf16.msra.mxu0 0
    %923 = vmatprep.mubr.bf16.mxu0 0
    %924 = vmatmul.mubr.bf16.gmra.mxu0 %v849
    %v925 = vpop.f32.mrf.mxu0
    %v926 = vadd.f32 0.0, %v925
    %v927 = vpop.f32.mrf.mxu0
    %v928 = vadd.f32 0.0, %v927
    %v929 = vpop.f32.mrf.mxu0
    %v930 = vpop.f32.mrf.mxu0
    %931 = vdwg.mxu0
    %v932 = vadd.f32 %v845, %v885
    %v933 = vadd.f32 %v846, %v887
    %v934 = vadd.f32 %v847, %v926
    %v935 = vadd.f32 %v848, %v928
    %v936 = vmul.f32 %v932, 0.5
    %v937 = vtanh.pop %v936
    %v938 = vmul.f32 %v937, 0.5
    %v939 = vadd.f32 %v938, 0.5
    %v940 = vmul.f32 %v933, 0.5
    %v941 = vtanh.pop %v940
    %v942 = vmul.f32 %v941, 0.5
    %v943 = vadd.f32 %v942, 0.5
    %v944 = vtanh.pop %v934
    %v945 = vmul.f32 %v935, 0.5
    %v946 = vtanh.pop %v945
    %v947 = vmul.f32 %v946, 0.5
    %v948 = vadd.f32 %v947, 0.5
    %v949 = vmul.f32 %v943, %v842
    %v950 = vmul.f32 %v939, %v944
    %v951 = vadd.f32 %v949, %v950
    %v952 = vtanh.pop %v951
    %v953 = vmul.f32 %v948, %v952
    %v954 = vld [vmem:[#allocation2 + $0x80] sm:$0xff]
    %v955 = vld [vmem:[#allocation2 + $0x88] sm:$0xff]
    %v956 = vld [vmem:[#allocation2 + $0x90] sm:$0xff]
    %v957 = vld [vmem:[#allocation2 + $0x98] sm:$0xff]
    %v958 = vpack.c.bf16 %v953, %v953
    %959 = vmatprep.subr.bf16.mxu0 %v488
    %960 = vmatpush1.bf16.msra.mxu0 %v487
    %961 = vmatprep.subr.bf16.mxu0 %v484
    %962 = vmatpush1.bf16.msra.mxu0 %v483
    %963 = vmatprep.subr.bf16.mxu0 %v480
    %964 = vmatpush1.bf16.msra.mxu0 %v479
    %965 = vmatprep.subr.bf16.mxu0 %v476
    %966 = vmatpush1.bf16.msra.mxu0 %v475
    %967 = vmatprep.subr.bf16.mxu0 %v472
    %968 = vmatpush1.bf16.msra.mxu0 %v471
    %969 = vmatprep.subr.bf16.mxu0 %v468
    %970 = vmatpush1.bf16.msra.mxu0 %v467
    %971 = vmatprep.subr.bf16.mxu0 %v464
    %972 = vmatpush1.bf16.msra.mxu0 %v463
    %973 = vmatprep.subr.bf16.mxu0 %v460
    %974 = vmatpush1.bf16.msra.mxu0 %v459
    %975 = vmatprep.subr.bf16.mxu0 0
    %976 = vmatpush2.bf16.msra.mxu0 0
    %977 = vmatprep.subr.bf16.mxu0 0
    %978 = vmatpush2.bf16.msra.mxu0 0
    %979 = vmatprep.subr.bf16.mxu0 0
    %980 = vmatpush2.bf16.msra.mxu0 0
    %981 = vmatprep.subr.bf16.mxu0 0
    %982 = vmatpush2.bf16.msra.mxu0 0
    %983 = vmatprep.subr.bf16.mxu0 0
    %984 = vmatpush2.bf16.msra.mxu0 0
    %985 = vmatprep.subr.bf16.mxu0 0
    %986 = vmatpush2.bf16.msra.mxu0 0
    %987 = vmatprep.subr.bf16.mxu0 0
    %988 = vmatpush2.bf16.msra.mxu0 0
    %989 = vmatprep.subr.bf16.mxu0 0
    %990 = vmatpush2.bf16.msra.mxu0 0
    %991 = vmatprep.mubr.bf16.mxu0 0
    %992 = vmatmul.mubr.bf16.gmra.mxu0 %v958
    %v993 = vpop.f32.mrf.mxu0
    %v994 = vadd.f32 0.0, %v993
    %v995 = vpop.f32.mrf.mxu0
    %v996 = vadd.f32 0.0, %v995
    %v997 = vpop.f32.mrf.mxu0
    %v998 = vpop.f32.mrf.mxu0
    %999 = vdwg.mxu0
    %1000 = vmatprep.subr.bf16.mxu0 %v490
    %1001 = vmatpush1.bf16.msra.mxu0 %v489
    %1002 = vmatprep.subr.bf16.mxu0 %v486
    %1003 = vmatpush1.bf16.msra.mxu0 %v485
    %1004 = vmatprep.subr.bf16.mxu0 %v482
    %1005 = vmatpush1.bf16.msra.mxu0 %v481
    %1006 = vmatprep.subr.bf16.mxu0 %v478
    %1007 = vmatpush1.bf16.msra.mxu0 %v477
    %1008 = vmatprep.subr.bf16.mxu0 %v474
    %1009 = vmatpush1.bf16.msra.mxu0 %v473
    %1010 = vmatprep.subr.bf16.mxu0 %v470
    %1011 = vmatpush1.bf16.msra.mxu0 %v469
    %1012 = vmatprep.subr.bf16.mxu0 %v466
    %1013 = vmatpush1.bf16.msra.mxu0 %v465
    %1014 = vmatprep.subr.bf16.mxu0 %v462
    %1015 = vmatpush1.bf16.msra.mxu0 %v461
    %1016 = vmatprep.subr.bf16.mxu0 0
    %1017 = vmatpush2.bf16.msra.mxu0 0
    %1018 = vmatprep.subr.bf16.mxu0 0
    %1019 = vmatpush2.bf16.msra.mxu0 0
    %1020 = vmatprep.subr.bf16.mxu0 0
    %1021 = vmatpush2.bf16.msra.mxu0 0
    %1022 = vmatprep.subr.bf16.mxu0 0
    %1023 = vmatpush2.bf16.msra.mxu0 0
    %1024 = vmatprep.subr.bf16.mxu0 0
    %1025 = vmatpush2.bf16.msra.mxu0 0
    %1026 = vmatprep.subr.bf16.mxu0 0
    %1027 = vmatpush2.bf16.msra.mxu0 0
    %1028 = vmatprep.subr.bf16.mxu0 0
    %1029 = vmatpush2.bf16.msra.mxu0 0
    %1030 = vmatprep.subr.bf16.mxu0 0
    %1031 = vmatpush2.bf16.msra.mxu0 0
    %1032 = vmatprep.mubr.bf16.mxu0 0
    %1033 = vmatmul.mubr.bf16.gmra.mxu0 %v958
    %v1034 = vpop.f32.mrf.mxu0
    %v1035 = vadd.f32 0.0, %v1034
    %v1036 = vpop.f32.mrf.mxu0
    %v1037 = vadd.f32 0.0, %v1036
    %v1038 = vpop.f32.mrf.mxu0
    %v1039 = vpop.f32.mrf.mxu0
    %1040 = vdwg.mxu0
    %v1041 = vadd.f32 %v954, %v994
    %v1042 = vadd.f32 %v955, %v996
    %v1043 = vadd.f32 %v956, %v1035
    %v1044 = vadd.f32 %v957, %v1037
    %v1045 = vmul.f32 %v1041, 0.5
    %v1046 = vtanh.pop %v1045
    %v1047 = vmul.f32 %v1046, 0.5
    %v1048 = vadd.f32 %v1047, 0.5
    %v1049 = vmul.f32 %v1042, 0.5
    %v1050 = vtanh.pop %v1049
    %v1051 = vmul.f32 %v1050, 0.5
    %v1052 = vadd.f32 %v1051, 0.5
    %v1053 = vtanh.pop %v1043
    %v1054 = vmul.f32 %v1044, 0.5
    %v1055 = vtanh.pop %v1054
    %v1056 = vmul.f32 %v1055, 0.5
    %v1057 = vadd.f32 %v1056, 0.5
    %v1058 = vmul.f32 %v1052, %v951
    %v1059 = vmul.f32 %v1048, %v1053
    %v1060 = vadd.f32 %v1058, %v1059
    %v1061 = vtanh.pop %v1060
    %v1062 = vmul.f32 %v1057, %v1061
    %v1063 = vld [vmem:[#allocation2 + $0xa0] sm:$0xff]
    %v1064 = vld [vmem:[#allocation2 + $0xa8] sm:$0xff]
    %v1065 = vld [vmem:[#allocation2 + $0xb0] sm:$0xff]
    %v1066 = vld [vmem:[#allocation2 + $0xb8] sm:$0xff]
    %v1067 = vpack.c.bf16 %v1062, %v1062
    %1068 = vmatprep.subr.bf16.mxu0 %v488
    %1069 = vmatpush1.bf16.msra.mxu0 %v487
    %1070 = vmatprep.subr.bf16.mxu0 %v484
    %1071 = vmatpush1.bf16.msra.mxu0 %v483
    %1072 = vmatprep.subr.bf16.mxu0 %v480
    %1073 = vmatpush1.bf16.msra.mxu0 %v479
    %1074 = vmatprep.subr.bf16.mxu0 %v476
    %1075 = vmatpush1.bf16.msra.mxu0 %v475
    %1076 = vmatprep.subr.bf16.mxu0 %v472
    %1077 = vmatpush1.bf16.msra.mxu0 %v471
    %1078 = vmatprep.subr.bf16.mxu0 %v468
    %1079 = vmatpush1.bf16.msra.mxu0 %v467
    %1080 = vmatprep.subr.bf16.mxu0 %v464
    %1081 = vmatpush1.bf16.msra.mxu0 %v463
    %1082 = vmatprep.subr.bf16.mxu0 %v460
    %1083 = vmatpush1.bf16.msra.mxu0 %v459
    %1084 = vmatprep.subr.bf16.mxu0 0
    %1085 = vmatpush2.bf16.msra.mxu0 0
    %1086 = vmatprep.subr.bf16.mxu0 0
    %1087 = vmatpush2.bf16.msra.mxu0 0
    %1088 = vmatprep.subr.bf16.mxu0 0
    %1089 = vmatpush2.bf16.msra.mxu0 0
    %1090 = vmatprep.subr.bf16.mxu0 0
    %1091 = vmatpush2.bf16.msra.mxu0 0
    %1092 = vmatprep.subr.bf16.mxu0 0
    %1093 = vmatpush2.bf16.msra.mxu0 0
    %1094 = vmatprep.subr.bf16.mxu0 0
    %1095 = vmatpush2.bf16.msra.mxu0 0
    %1096 = vmatprep.subr.bf16.mxu0 0
    %1097 = vmatpush2.bf16.msra.mxu0 0
    %1098 = vmatprep.subr.bf16.mxu0 0
    %1099 = vmatpush2.bf16.msra.mxu0 0
    %1100 = vmatprep.mubr.bf16.mxu0 0
    %1101 = vmatmul.mubr.bf16.gmra.mxu0 %v1067
    %v1102 = vpop.f32.mrf.mxu0
    %v1103 = vadd.f32 0.0, %v1102
    %v1104 = vpop.f32.mrf.mxu0
    %v1105 = vadd.f32 0.0, %v1104
    %v1106 = vpop.f32.mrf.mxu0
    %v1107 = vpop.f32.mrf.mxu0
    %1108 = vdwg.mxu0
    %1109 = vmatprep.subr.bf16.mxu0 %v490
    %1110 = vmatpush1.bf16.msra.mxu0 %v489
    %1111 = vmatprep.subr.bf16.mxu0 %v486
    %1112 = vmatpush1.bf16.msra.mxu0 %v485
    %1113 = vmatprep.subr.bf16.mxu0 %v482
    %1114 = vmatpush1.bf16.msra.mxu0 %v481
    %1115 = vmatprep.subr.bf16.mxu0 %v478
    %1116 = vmatpush1.bf16.msra.mxu0 %v477
    %1117 = vmatprep.subr.bf16.mxu0 %v474
    %1118 = vmatpush1.bf16.msra.mxu0 %v473
    %1119 = vmatprep.subr.bf16.mxu0 %v470
    %1120 = vmatpush1.bf16.msra.mxu0 %v469
    %1121 = vmatprep.subr.bf16.mxu0 %v466
    %1122 = vmatpush1.bf16.msra.mxu0 %v465
    %1123 = vmatprep.subr.bf16.mxu0 %v462
    %1124 = vmatpush1.bf16.msra.mxu0 %v461
    %1125 = vmatprep.subr.bf16.mxu0 0
    %1126 = vmatpush2.bf16.msra.mxu0 0
    %1127 = vmatprep.subr.bf16.mxu0 0
    %1128 = vmatpush2.bf16.msra.mxu0 0
    %1129 = vmatprep.subr.bf16.mxu0 0
    %1130 = vmatpush2.bf16.msra.mxu0 0
    %1131 = vmatprep.subr.bf16.mxu0 0
    %1132 = vmatpush2.bf16.msra.mxu0 0
    %1133 = vmatprep.subr.bf16.mxu0 0
    %1134 = vmatpush2.bf16.msra.mxu0 0
    %1135 = vmatprep.subr.bf16.mxu0 0
    %1136 = vmatpush2.bf16.msra.mxu0 0
    %1137 = vmatprep.subr.bf16.mxu0 0
    %1138 = vmatpush2.bf16.msra.mxu0 0
    %1139 = vmatprep.subr.bf16.mxu0 0
    %1140 = vmatpush2.bf16.msra.mxu0 0
    %1141 = vmatprep.mubr.bf16.mxu0 0
    %1142 = vmatmul.mubr.bf16.gmra.mxu0 %v1067
    %v1143 = vpop.f32.mrf.mxu0
    %v1144 = vadd.f32 0.0, %v1143
    %v1145 = vpop.f32.mrf.mxu0
    %v1146 = vadd.f32 0.0, %v1145
    %v1147 = vpop.f32.mrf.mxu0
    %v1148 = vpop.f32.mrf.mxu0
    %1149 = vdwg.mxu0
    %v1150 = vadd.f32 %v1063, %v1103
    %v1151 = vadd.f32 %v1064, %v1105
    %v1152 = vadd.f32 %v1065, %v1144
    %v1153 = vadd.f32 %v1066, %v1146
    %v1154 = vmul.f32 %v1150, 0.5
    %v1155 = vtanh.pop %v1154
    %v1156 = vmul.f32 %v1155, 0.5
    %v1157 = vadd.f32 %v1156, 0.5
    %v1158 = vmul.f32 %v1151, 0.5
    %v1159 = vtanh.pop %v1158
    %v1160 = vmul.f32 %v1159, 0.5
    %v1161 = vadd.f32 %v1160, 0.5
    %v1162 = vtanh.pop %v1152
    %v1163 = vmul.f32 %v1153, 0.5
    %v1164 = vtanh.pop %v1163
    %v1165 = vmul.f32 %v1164, 0.5
    %v1166 = vadd.f32 %v1165, 0.5
    %v1167 = vmul.f32 %v1161, %v1060
    %v1168 = vmul.f32 %v1157, %v1162
    %v1169 = vadd.f32 %v1167, %v1168
    %v1170 = vtanh.pop %v1169
    %v1171 = vmul.f32 %v1166, %v1170
    %v1172 = vld [vmem:[#allocation2 + $0xc0] sm:$0xff]
    %v1173 = vld [vmem:[#allocation2 + $0xc8] sm:$0xff]
    %v1174 = vld [vmem:[#allocation2 + $0xd0] sm:$0xff]
    %v1175 = vld [vmem:[#allocation2 + $0xd8] sm:$0xff]
    %v1176 = vpack.c.bf16 %v1171, %v1171
    %1177 = vmatprep.subr.bf16.mxu0 %v488
    %1178 = vmatpush1.bf16.msra.mxu0 %v487
    %1179 = vmatprep.subr.bf16.mxu0 %v484
    %1180 = vmatpush1.bf16.msra.mxu0 %v483
    %1181 = vmatprep.subr.bf16.mxu0 %v480
    %1182 = vmatpush1.bf16.msra.mxu0 %v479
    %1183 = vmatprep.subr.bf16.mxu0 %v476
    %1184 = vmatpush1.bf16.msra.mxu0 %v475
    %1185 = vmatprep.subr.bf16.mxu0 %v472
    %1186 = vmatpush1.bf16.msra.mxu0 %v471
    %1187 = vmatprep.subr.bf16.mxu0 %v468
    %1188 = vmatpush1.bf16.msra.mxu0 %v467
    %1189 = vmatprep.subr.bf16.mxu0 %v464
    %1190 = vmatpush1.bf16.msra.mxu0 %v463
    %1191 = vmatprep.subr.bf16.mxu0 %v460
    %1192 = vmatpush1.bf16.msra.mxu0 %v459
    %1193 = vmatprep.subr.bf16.mxu0 0
    %1194 = vmatpush2.bf16.msra.mxu0 0
    %1195 = vmatprep.subr.bf16.mxu0 0
    %1196 = vmatpush2.bf16.msra.mxu0 0
    %1197 = vmatprep.subr.bf16.mxu0 0
    %1198 = vmatpush2.bf16.msra.mxu0 0
    %1199 = vmatprep.subr.bf16.mxu0 0
    %1200 = vmatpush2.bf16.msra.mxu0 0
    %1201 = vmatprep.subr.bf16.mxu0 0
    %1202 = vmatpush2.bf16.msra.mxu0 0
    %1203 = vmatprep.subr.bf16.mxu0 0
    %1204 = vmatpush2.bf16.msra.mxu0 0
    %1205 = vmatprep.subr.bf16.mxu0 0
    %1206 = vmatpush2.bf16.msra.mxu0 0
    %1207 = vmatprep.subr.bf16.mxu0 0
    %1208 = vmatpush2.bf16.msra.mxu0 0
    %1209 = vmatprep.mubr.bf16.mxu0 0
    %1210 = vmatmul.mubr.bf16.gmra.mxu0 %v1176
    %v1211 = vpop.f32.mrf.mxu0
    %v1212 = vadd.f32 0.0, %v1211
    %v1213 = vpop.f32.mrf.mxu0
    %v1214 = vadd.f32 0.0, %v1213
    %v1215 = vpop.f32.mrf.mxu0
    %v1216 = vpop.f32.mrf.mxu0
    %1217 = vdwg.mxu0
    %1218 = vmatprep.subr.bf16.mxu0 %v490
    %1219 = vmatpush1.bf16.msra.mxu0 %v489
    %1220 = vmatprep.subr.bf16.mxu0 %v486
    %1221 = vmatpush1.bf16.msra.mxu0 %v485
    %1222 = vmatprep.subr.bf16.mxu0 %v482
    %1223 = vmatpush1.bf16.msra.mxu0 %v481
    %1224 = vmatprep.subr.bf16.mxu0 %v478
    %1225 = vmatpush1.bf16.msra.mxu0 %v477
    %1226 = vmatprep.subr.bf16.mxu0 %v474
    %1227 = vmatpush1.bf16.msra.mxu0 %v473
    %1228 = vmatprep.subr.bf16.mxu0 %v470
    %1229 = vmatpush1.bf16.msra.mxu0 %v469
    %1230 = vmatprep.subr.bf16.mxu0 %v466
    %1231 = vmatpush1.bf16.msra.mxu0 %v465
    %1232 = vmatprep.subr.bf16.mxu0 %v462
    %1233 = vmatpush1.bf16.msra.mxu0 %v461
    %1234 = vmatprep.subr.bf16.mxu0 0
    %1235 = vmatpush2.bf16.msra.mxu0 0
    %1236 = vmatprep.subr.bf16.mxu0 0
    %1237 = vmatpush2.bf16.msra.mxu0 0
    %1238 = vmatprep.subr.bf16.mxu0 0
    %1239 = vmatpush2.bf16.msra.mxu0 0
    %1240 = vmatprep.subr.bf16.mxu0 0
    %1241 = vmatpush2.bf16.msra.mxu0 0
    %1242 = vmatprep.subr.bf16.mxu0 0
    %1243 = vmatpush2.bf16.msra.mxu0 0
    %1244 = vmatprep.subr.bf16.mxu0 0
    %1245 = vmatpush2.bf16.msra.mxu0 0
    %1246 = vmatprep.subr.bf16.mxu0 0
    %1247 = vmatpush2.bf16.msra.mxu0 0
    %1248 = vmatprep.subr.bf16.mxu0 0
    %1249 = vmatpush2.bf16.msra.mxu0 0
    %1250 = vmatprep.mubr.bf16.mxu0 0
    %1251 = vmatmul.mubr.bf16.gmra.mxu0 %v1176
    %v1252 = vpop.f32.mrf.mxu0
    %v1253 = vadd.f32 0.0, %v1252
    %v1254 = vpop.f32.mrf.mxu0
    %v1255 = vadd.f32 0.0, %v1254
    %v1256 = vpop.f32.mrf.mxu0
    %v1257 = vpop.f32.mrf.mxu0
    %1258 = vdwg.mxu0
    %v1259 = vadd.f32 %v1172, %v1212
    %v1260 = vadd.f32 %v1173, %v1214
    %v1261 = vadd.f32 %v1174, %v1253
    %v1262 = vadd.f32 %v1175, %v1255
    %v1263 = vmul.f32 %v1259, 0.5
    %v1264 = vtanh.pop %v1263
    %v1265 = vmul.f32 %v1264, 0.5
    %v1266 = vadd.f32 %v1265, 0.5
    %v1267 = vmul.f32 %v1260, 0.5
    %v1268 = vtanh.pop %v1267
    %v1269 = vmul.f32 %v1268, 0.5
    %v1270 = vadd.f32 %v1269, 0.5
    %v1271 = vtanh.pop %v1261
    %v1272 = vmul.f32 %v1262, 0.5
    %v1273 = vtanh.pop %v1272
    %v1274 = vmul.f32 %v1273, 0.5
    %v1275 = vadd.f32 %v1274, 0.5
    %v1276 = vmul.f32 %v1270, %v1169
    %v1277 = vmul.f32 %v1266, %v1271
    %v1278 = vadd.f32 %v1276, %v1277
    %v1279 = vtanh.pop %v1278
    %v1280 = vmul.f32 %v1275, %v1279
    %v1281 = vld [vmem:[#allocation2 + $0xe0] sm:$0xff]
    %v1282 = vld [vmem:[#allocation2 + $0xe8] sm:$0xff]
    %v1283 = vld [vmem:[#allocation2 + $0xf0] sm:$0xff]
    %v1284 = vld [vmem:[#allocation2 + $0xf8] sm:$0xff]
    %v1285 = vpack.c.bf16 %v1280, %v1280
    %1286 = vmatprep.subr.bf16.mxu0 %v488
    %1287 = vmatpush1.bf16.msra.mxu0 %v487
    %1288 = vmatprep.subr.bf16.mxu0 %v484
    %1289 = vmatpush1.bf16.msra.mxu0 %v483
    %1290 = vmatprep.subr.bf16.mxu0 %v480
    %1291 = vmatpush1.bf16.msra.mxu0 %v479
    %1292 = vmatprep.subr.bf16.mxu0 %v476
    %1293 = vmatpush1.bf16.msra.mxu0 %v475
    %1294 = vmatprep.subr.bf16.mxu0 %v472
    %1295 = vmatpush1.bf16.msra.mxu0 %v471
    %1296 = vmatprep.subr.bf16.mxu0 %v468
    %1297 = vmatpush1.bf16.msra.mxu0 %v467
    %1298 = vmatprep.subr.bf16.mxu0 %v464
    %1299 = vmatpush1.bf16.msra.mxu0 %v463
    %1300 = vmatprep.subr.bf16.mxu0 %v460
    %1301 = vmatpush1.bf16.msra.mxu0 %v459
    %1302 = vmatprep.subr.bf16.mxu0 0
    %1303 = vmatpush2.bf16.msra.mxu0 0
    %1304 = vmatprep.subr.bf16.mxu0 0
    %1305 = vmatpush2.bf16.msra.mxu0 0
    %1306 = vmatprep.subr.bf16.mxu0 0
    %1307 = vmatpush2.bf16.msra.mxu0 0
    %1308 = vmatprep.subr.bf16.mxu0 0
    %1309 = vmatpush2.bf16.msra.mxu0 0
    %1310 = vmatprep.subr.bf16.mxu0 0
    %1311 = vmatpush2.bf16.msra.mxu0 0
    %1312 = vmatprep.subr.bf16.mxu0 0
    %1313 = vmatpush2.bf16.msra.mxu0 0
    %1314 = vmatprep.subr.bf16.mxu0 0
    %1315 = vmatpush2.bf16.msra.mxu0 0
    %1316 = vmatprep.subr.bf16.mxu0 0
    %1317 = vmatpush2.bf16.msra.mxu0 0
    %1318 = vmatprep.mubr.bf16.mxu0 0
    %1319 = vmatmul.mubr.bf16.gmra.mxu0 %v1285
    %v1320 = vpop.f32.mrf.mxu0
    %v1321 = vadd.f32 0.0, %v1320
    %v1322 = vpop.f32.mrf.mxu0
    %v1323 = vadd.f32 0.0, %v1322
    %v1324 = vpop.f32.mrf.mxu0
    %v1325 = vpop.f32.mrf.mxu0
    %1326 = vdwg.mxu0
    %1327 = vmatprep.subr.bf16.mxu0 %v490
    %1328 = vmatpush1.bf16.msra.mxu0 %v489
    %1329 = vmatprep.subr.bf16.mxu0 %v486
    %1330 = vmatpush1.bf16.msra.mxu0 %v485
    %1331 = vmatprep.subr.bf16.mxu0 %v482
    %1332 = vmatpush1.bf16.msra.mxu0 %v481
    %1333 = vmatprep.subr.bf16.mxu0 %v478
    %1334 = vmatpush1.bf16.msra.mxu0 %v477
    %1335 = vmatprep.subr.bf16.mxu0 %v474
    %1336 = vmatpush1.bf16.msra.mxu0 %v473
    %1337 = vmatprep.subr.bf16.mxu0 %v470
    %1338 = vmatpush1.bf16.msra.mxu0 %v469
    %1339 = vmatprep.subr.bf16.mxu0 %v466
    %1340 = vmatpush1.bf16.msra.mxu0 %v465
    %1341 = vmatprep.subr.bf16.mxu0 %v462
    %1342 = vmatpush1.bf16.msra.mxu0 %v461
    %1343 = vmatprep.subr.bf16.mxu0 0
    %1344 = vmatpush2.bf16.msra.mxu0 0
    %1345 = vmatprep.subr.bf16.mxu0 0
    %1346 = vmatpush2.bf16.msra.mxu0 0
    %1347 = vmatprep.subr.bf16.mxu0 0
    %1348 = vmatpush2.bf16.msra.mxu0 0
    %1349 = vmatprep.subr.bf16.mxu0 0
    %1350 = vmatpush2.bf16.msra.mxu0 0
    %1351 = vmatprep.subr.bf16.mxu0 0
    %1352 = vmatpush2.bf16.msra.mxu0 0
    %1353 = vmatprep.subr.bf16.mxu0 0
    %1354 = vmatpush2.bf16.msra.mxu0 0
    %1355 = vmatprep.subr.bf16.mxu0 0
    %1356 = vmatpush2.bf16.msra.mxu0 0
    %1357 = vmatprep.subr.bf16.mxu0 0
    %1358 = vmatpush2.bf16.msra.mxu0 0
    %1359 = vmatprep.mubr.bf16.mxu0 0
    %1360 = vmatmul.mubr.bf16.gmra.mxu0 %v1285
    %v1361 = vpop.f32.mrf.mxu0
    %v1362 = vadd.f32 0.0, %v1361
    %v1363 = vpop.f32.mrf.mxu0
    %v1364 = vadd.f32 0.0, %v1363
    %v1365 = vpop.f32.mrf.mxu0
    %v1366 = vpop.f32.mrf.mxu0
    %1367 = vdwg.mxu0
    %v1368 = vadd.f32 %v1281, %v1321
    %v1369 = vadd.f32 %v1282, %v1323
    %v1370 = vadd.f32 %v1283, %v1362
    %v1371 = vadd.f32 %v1284, %v1364
    %v1372 = vmul.f32 %v1368, 0.5
    %v1373 = vtanh.pop %v1372
    %v1374 = vmul.f32 %v1373, 0.5
    %v1375 = vadd.f32 %v1374, 0.5
    %v1376 = vmul.f32 %v1369, 0.5
    %v1377 = vtanh.pop %v1376
    %v1378 = vmul.f32 %v1377, 0.5
    %v1379 = vadd.f32 %v1378, 0.5
    %v1380 = vtanh.pop %v1370
    %v1381 = vmul.f32 %v1371, 0.5
    %v1382 = vtanh.pop %v1381
    %v1383 = vmul.f32 %v1382, 0.5
    %v1384 = vadd.f32 %v1383, 0.5
    %v1385 = vmul.f32 %v1379, %v1278
    %v1386 = vmul.f32 %v1375, %v1380
    %v1387 = vadd.f32 %v1385, %v1386
    %v1388 = vtanh.pop %v1387
    %v1389 = vmul.f32 %v1384, %v1388
    %v1390 = vpack.c.bf16 %v1389, %v1389
    %v1391 = vld [vmem:[#allocation6] sm:$0xf]
    %v1392 = vld [vmem:[#allocation6 + $0x4] sm:$0xf]
    %v1393 = vld [vmem:[#allocation6 + $0x8] sm:$0xf]
    %v1394 = vld [vmem:[#allocation6 + $0xc] sm:$0xf]
    %v1395 = vld [vmem:[#allocation6 + $0x10] sm:$0xf]
    %v1396 = vld [vmem:[#allocation6 + $0x14] sm:$0xf]
    %v1397 = vld [vmem:[#allocation6 + $0x18] sm:$0xf]
    %v1398 = vld [vmem:[#allocation6 + $0x1c] sm:$0xf]
    %v1399 = vld [vmem:[#allocation6 + $0x20] sm:$0xf]
    %v1400 = vld [vmem:[#allocation6 + $0x24] sm:$0xf]
    %v1401 = vld [vmem:[#allocation6 + $0x28] sm:$0xf]
    %v1402 = vld [vmem:[#allocation6 + $0x2c] sm:$0xf]
    %v1403 = vld [vmem:[#allocation6 + $0x30] sm:$0xf]
    %v1404 = vld [vmem:[#allocation6 + $0x34] sm:$0xf]
    %v1405 = vld [vmem:[#allocation6 + $0x38] sm:$0xf]
    %v1406 = vld [vmem:[#allocation6 + $0x3c] sm:$0xf]
    %v1407 = vld [vmem:[%s5] sm:$0x1]
    %v1409 = vlaneseq
    %v1410 = vshrl.u32 %v1409, 7
    %v1411 = vsub.s32 0, %v1410
    %v1412 = vrot.slane %v1407, %v1411
    %v1430 = vunpack.c.l.b16 %v1391
    %v1431 = vunpack.c.l.b16 %v1392
    %v1432 = vunpack.c.l.b16 %v1393
    %v1433 = vunpack.c.l.b16 %v1394
    %v1434 = vunpack.c.l.b16 %v1395
    %v1435 = vunpack.c.l.b16 %v1396
    %v1436 = vunpack.c.l.b16 %v1397
    %v1437 = vunpack.c.l.b16 %v1398
    %v1438 = vunpack.c.l.b16 %v1399
    %v1439 = vunpack.c.l.b16 %v1400
    %v1440 = vunpack.c.l.b16 %v1401
    %v1441 = vunpack.c.l.b16 %v1402
    %v1442 = vunpack.c.l.b16 %v1403
    %v1443 = vunpack.c.l.b16 %v1404
    %v1444 = vunpack.c.l.b16 %v1405
    %v1445 = vunpack.c.l.b16 %v1406
    %v1446 = vpack.c.b16 %v1431, %v1430
    %v1447 = vpack.c.b16 %v1433, %v1432
    %v1448 = vpack.c.b16 %v1435, %v1434
    %v1449 = vpack.c.b16 %v1437, %v1436
    %v1450 = vpack.c.b16 %v1439, %v1438
    %v1451 = vpack.c.b16 %v1441, %v1440
    %v1452 = vpack.c.b16 %v1443, %v1442
    %v1453 = vpack.c.b16 %v1445, %v1444
    %1462 = vmatprep.subr.bf16.mxu0 0
    %1463 = vmatpush1.bf16.msra.mxu0 %v1453
    %1464 = vmatprep.subr.bf16.mxu0 0
    %1465 = vmatpush1.bf16.msra.mxu0 %v1452
    %1466 = vmatprep.subr.bf16.mxu0 0
    %1467 = vmatpush1.bf16.msra.mxu0 %v1451
    %1468 = vmatprep.subr.bf16.mxu0 0
    %1469 = vmatpush1.bf16.msra.mxu0 %v1450
    %1470 = vmatprep.subr.bf16.mxu0 0
    %1471 = vmatpush1.bf16.msra.mxu0 %v1449
    %1472 = vmatprep.subr.bf16.mxu0 0
    %1473 = vmatpush1.bf16.msra.mxu0 %v1448
    %1474 = vmatprep.subr.bf16.mxu0 0
    %1475 = vmatpush1.bf16.msra.mxu0 %v1447
    %1476 = vmatprep.subr.bf16.mxu0 0
    %1477 = vmatpush1.bf16.msra.mxu0 %v1446
    %1478 = vmatprep.subr.bf16.mxu0 0
    %1479 = vmatpush2.bf16.msra.mxu0 0
    %1480 = vmatprep.subr.bf16.mxu0 0
    %1481 = vmatpush2.bf16.msra.mxu0 0
    %1482 = vmatprep.subr.bf16.mxu0 0
    %1483 = vmatpush2.bf16.msra.mxu0 0
    %1484 = vmatprep.subr.bf16.mxu0 0
    %1485 = vmatpush2.bf16.msra.mxu0 0
    %1486 = vmatprep.subr.bf16.mxu0 0
    %1487 = vmatpush2.bf16.msra.mxu0 0
    %1488 = vmatprep.subr.bf16.mxu0 0
    %1489 = vmatpush2.bf16.msra.mxu0 0
    %1490 = vmatprep.subr.bf16.mxu0 0
    %1491 = vmatpush2.bf16.msra.mxu0 0
    %1492 = vmatprep.subr.bf16.mxu0 0
    %1493 = vmatpush2.bf16.msra.mxu0 0
    %1494 = vmatprep.mubr.bf16.mxu0 0
    %1495 = vmatmul.mubr.bf16.gmra.mxu0 %v1390
    %v1496 = vpop.f32.mrf.mxu0
    %v1497 = vadd.f32 %v1412, %v1496
    %v1498 = vpop.f32.mrf.mxu0
    %v1499 = vpop.f32.mrf.mxu0
    %v1500 = vpop.f32.mrf.mxu0
    %1501 = vdwg.mxu0
    %1502 = vst [vmem:[#allocation8] sm:$0xff] %v1497
    // Predicated region
    $region34: #{tpu_custom_call.1} parent=1 // pred_check
      _
    $region35: #{tpu_custom_call.1} parent=1 // pred_check_branch
      %1504 = sbr.rel (0) target = $region37
    $region36: #{tpu_custom_call.1} parent=1 // pred_region
      %s1506 = ssub.s32 128, 128
      %1507 = vsyncadd [#allocation5], %s1506
      %s1509 = sshll.u32 [#allocation8], 4
      %s1510 = int_to_ptr.vmem [resolvable:$true] %s1509
      %1512 = dma.vmem_to_hbm [thread:$0]  %s1510, 128, %s6, [#allocation5]
    $region37: #{tpu_custom_call.1} parent=1 // pred_fallthru
      _
    // Predicated region
    $region38: #{tpu_custom_call.1} parent=1 // pred_check
      _
    $region39: #{tpu_custom_call.1} parent=1 // pred_check_branch
      %1514 = sbr.rel (0) target = $region41
    $region40: #{tpu_custom_call.1} parent=1 // pred_region
      %1515 = dma.done [#allocation5], 128
    $region41: #{tpu_custom_call.1} parent=1 // pred_fallthru
      _
    %1516 = vsyncpa [#allocation4], 1
    %1517 = vsyncpa [#allocation7], 1
    %1518 = vsyncpa [#allocation5], 1

</llo_original>
